<compile_context>
chip_gen: v7x
topology: tpu7x:2x2x1
jax: 0.10.0
libtpu: 0.0.40
codegen_flags: <defaults>
</compile_context>

<pallas_src>
import math
import jax
import jax.numpy as jnp
from jax.experimental import pallas as pl
from jax.experimental.pallas import tpu as pltpu

NHID_P = 128    # lane-dense padded hidden width
NCLS_P = 128    # lane-dense padded class width
NEG_INF = -1e30


def nn_forward_kernel(x_ref, adj_ref,
                      w1_ref, b1_ref, w2_ref, b2_ref,
                      w3_ref, b3_ref, w4_ref, b4_ref,
                      fcw_ref, fcb_ref,
                      out_ref):
    # Per-graph block: x_ref (1, N, nfeat) bf16, adj_ref (1, N, N) bf16.
    adj = adj_ref[0]
    h = x_ref[0]

    def gcn_relu(h_bf16, w_ref, b_ref):
        # support = h @ W ; out = adj @ support + b ; relu
        # bf16 MXU inputs, f32 accumulation.
        support = jnp.dot(h_bf16, w_ref[...], preferred_element_type=jnp.float32)
        out = jnp.dot(adj, support.astype(jnp.bfloat16),
                      preferred_element_type=jnp.float32) + b_ref[...]
        # ReLU in f32 (v5e has no bf16 VPU); cast down for the next MXU pass.
        return jnp.maximum(out, 0.0).astype(jnp.bfloat16)

    # dropout(training=False) == identity, omitted.
    h = gcn_relu(h, w1_ref, b1_ref)
    h = gcn_relu(h, w2_ref, b2_ref)
    h = gcn_relu(h, w3_ref, b3_ref)
    h = gcn_relu(h, w4_ref, b4_ref)

    # fc: h @ W_fc^T + b.  fcw is pre-transposed & zero-padded to (NHID_P, NCLS_P);
    # padded classes carry bias = -1e30 so exp() underflows to 0 below.
    logits = jnp.dot(h, fcw_ref[...], preferred_element_type=jnp.float32) + fcb_ref[...]

    # log_softmax over the class axis, in f32 (max-shifted, stable).
    m = jnp.max(logits, axis=1, keepdims=True)
    shifted = logits - m
    lse = jnp.log(jnp.sum(jnp.exp(shifted), axis=1, keepdims=True))
    out_ref[0] = shifted - lse


def nn_forward(x_b, adj_b, kparams, nclass):
    """x_b: (B, N, nfeat) f32, adj_b: (B, N, N) f32 -> (B, N, nclass) f32."""
    B, N, nfeat = x_b.shape
    x_bf = x_b.astype(jnp.bfloat16)
    adj_bf = adj_b.astype(jnp.bfloat16)

    (w1, b1, w2, b2, w3, b3, w4, b4, fcw, fcb) = kparams
    args = (x_bf, adj_bf, w1, b1, w2, b2, w3, b3, w4, b4, fcw, fcb)

    def batch_spec(shape):
        # one graph per grid step along the leading batch axis
        return pl.BlockSpec((1,) + shape[1:],
                            lambda b: (b,) + (0,) * (len(shape) - 1))

    def resident_spec(shape):
        # same block every grid step -> weights stay resident in VMEM
        return pl.BlockSpec(shape, lambda b: (0,) * len(shape))

    in_specs = [batch_spec(x_bf.shape), batch_spec(adj_bf.shape)]
    in_specs += [resident_spec(p.shape)
                 for p in (w1, b1, w2, b2, w3, b3, w4, b4, fcw, fcb)]
    out_specs = pl.BlockSpec((1, N, NCLS_P), lambda b: (b, 0, 0))

    # Advisory cost hint so XLA can schedule surrounding ops around this call.
    flops = 2 * B * (N * nfeat * NHID_P + N * N * NHID_P
                     + 3 * (N * NHID_P * NHID_P + N * N * NHID_P)
                     + N * NHID_P * NCLS_P)
    bytes_accessed = sum(int(a.size) * a.dtype.itemsize for a in args) \
        + B * N * NCLS_P * 4
    cost = pl.CostEstimate(flops=flops,
                           transcendentals=B * N * (NCLS_P + 1),
                           bytes_accessed=bytes_accessed)

    out_padded = pl.pallas_call(
        nn_forward_kernel,
        out_shape=jax.ShapeDtypeStruct((B, N, NCLS_P), jnp.float32),
        grid=(B,),
        in_specs=in_specs,
        out_specs=out_specs,
        compiler_params=pltpu.CompilerParams(
            dimension_semantics=("parallel",)),
        cost_estimate=cost,
    )(*args)
    return out_padded[:, :, :nclass]


def init_params(key, nfeat, nhid, nclass):
    """Deterministic init mirroring GraphConvolution.reset_parameters /
    nn.Linear default (uniform(-stdv, stdv)).  fc weight kept in PyTorch
    (nclass, nhid) layout."""
    keys = jax.random.split(key, 10)
    params = []
    dims = [(nfeat, nhid), (nhid, nhid), (nhid, nhid), (nhid, nhid)]
    ki = 0
    for fin, fout in dims:
        stdv = 1.0 / math.sqrt(fout)
        w = jax.random.uniform(keys[ki], (fin, fout), jnp.float32, -stdv, stdv); ki += 1
        b = jax.random.uniform(keys[ki], (1, fout), jnp.float32, -stdv, stdv); ki += 1
        params += [w, b]
    stdv = 1.0 / math.sqrt(nhid)
    fcw = jax.random.uniform(keys[ki], (nclass, nhid), jnp.float32, -stdv, stdv); ki += 1
    fcb = jax.random.uniform(keys[ki], (1, nclass), jnp.float32, -stdv, stdv); ki += 1
    params += [fcw, fcb]
    return tuple(params)


def prepare_params(params):
    """Pad weights/biases to lane-dense widths (128) and cast weights to bf16.
    Zero-padding of hidden units is exact (padded activations stay 0 through
    relu and feed zero rows downstream); padded class columns get a -1e30 bias
    so they drop out of the log-softmax."""
    (w1, b1, w2, b2, w3, b3, w4, b4, fcw, fcb) = params

    def pad_to(a, rows, cols):
        return jnp.pad(a, ((0, rows - a.shape[0]), (0, cols - a.shape[1])))

    nfeat, _ = w1.shape
    nclass = fcw.shape[0]
    kp = [pad_to(w1, nfeat, NHID_P).astype(jnp.bfloat16),
          pad_to(b1, 1, NHID_P)]
    for w, b in ((w2, b2), (w3, b3), (w4, b4)):
        kp.append(pad_to(w, NHID_P, NHID_P).astype(jnp.bfloat16))
        kp.append(pad_to(b, 1, NHID_P))
    kp.append(pad_to(fcw.T, NHID_P, NCLS_P).astype(jnp.bfloat16))
    fcb_p = jnp.full((1, NCLS_P), NEG_INF, jnp.float32).at[:, :nclass].set(fcb)
    kp.append(fcb_p)
    return tuple(kp)


def reference_forward(x, adj, params):
    """Pure-JAX f32 reference following the PyTorch module (eval mode)."""
    (w1, b1, w2, b2, w3, b3, w4, b4, fcw, fcb) = params
    h = x
    for w, b in ((w1, b1), (w2, b2), (w3, b3), (w4, b4)):
        h = jnp.maximum(adj @ (h @ w) + b, 0.0)
    logits = h @ fcw.T + fcb       # nn.Linear: x @ W^T + b
    return jax.nn.log_softmax(logits, axis=1)


if __name__ == "__main__":
    # small shapes: 4 graphs, 8 nodes, nfeat=32, nhid=32, nclass=16
    B, N, nfeat, nhid, nclass = 4, 8, 32, 32, 16
    key = jax.random.PRNGKey(0)
    kx, kadj, kp = jax.random.split(key, 3)

    x = jax.random.normal(kx, (B, N, nfeat), jnp.float32)
    # symmetric-normalized-ish dense adjacency (spmm done densely)
    a = jax.random.uniform(kadj, (B, N, N), jnp.float32)
    a = (a > 0.6).astype(jnp.float32) + jnp.eye(N, dtype=jnp.float32)[None]
    deg = jnp.sum(a, axis=2, keepdims=True)
    adj = a / deg

    params = init_params(kp, nfeat, nhid, nclass)
    kparams = prepare_params(params)

    out = nn_forward(x, adj, kparams, nclass)
    out = jax.block_until_ready(out)

    ref = jax.vmap(lambda xb, ab: reference_forward(xb, ab, params))(x, adj)
    assert out.shape == (B, N, nclass)
    # bf16 matmul inputs (f32 accumulation) -> loosened tolerance vs f32 ref
    assert jnp.allclose(out, ref, atol=3e-2, rtol=3e-2), \
        float(jnp.max(jnp.abs(out - ref)))
    print("KERNEL_OK")
</pallas_src>

<mosaic_0001>
module attributes {stable_mosaic.version = 11 : i64} {
  func.func @nn_forward_kernel(%arg0: i32, %arg1: memref<1x8x32xbf16, #tpu.memory_space<vmem>>, %arg2: memref<1x8x8xbf16, #tpu.memory_space<vmem>>, %arg3: memref<32x128xbf16, #tpu.memory_space<vmem>>, %arg4: memref<1x128xf32, #tpu.memory_space<vmem>>, %arg5: memref<128x128xbf16, #tpu.memory_space<vmem>>, %arg6: memref<1x128xf32, #tpu.memory_space<vmem>>, %arg7: memref<128x128xbf16, #tpu.memory_space<vmem>>, %arg8: memref<1x128xf32, #tpu.memory_space<vmem>>, %arg9: memref<128x128xbf16, #tpu.memory_space<vmem>>, %arg10: memref<1x128xf32, #tpu.memory_space<vmem>>, %arg11: memref<128x128xbf16, #tpu.memory_space<vmem>>, %arg12: memref<1x128xf32, #tpu.memory_space<vmem>>, %arg13: memref<1x8x128xf32, #tpu.memory_space<vmem>>) attributes {dimension_semantics = [#tpu.dimension_semantics<parallel>], iteration_bounds = array<i64: 4>, scalar_prefetch = 0 : i64, scratch_operands = 0 : i64, tpu.core_type = #tpu.core_type<tc>, window_params = [{transform_indices = @transform_0, window_bounds = array<i64: 1, 8, 32>}, {transform_indices = @transform_1, window_bounds = array<i64: 1, 8, 8>}, {pipeline_mode = #tpu.pipeline_mode<synchronous>, transform_indices = @transform_2, window_bounds = array<i64: 32, 128>}, {pipeline_mode = #tpu.pipeline_mode<synchronous>, transform_indices = @transform_3, window_bounds = array<i64: 1, 128>}, {pipeline_mode = #tpu.pipeline_mode<synchronous>, transform_indices = @transform_4, window_bounds = array<i64: 128, 128>}, {pipeline_mode = #tpu.pipeline_mode<synchronous>, transform_indices = @transform_5, window_bounds = array<i64: 1, 128>}, {pipeline_mode = #tpu.pipeline_mode<synchronous>, transform_indices = @transform_6, window_bounds = array<i64: 128, 128>}, {pipeline_mode = #tpu.pipeline_mode<synchronous>, transform_indices = @transform_7, window_bounds = array<i64: 1, 128>}, {pipeline_mode = #tpu.pipeline_mode<synchronous>, transform_indices = @transform_8, window_bounds = array<i64: 128, 128>}, {pipeline_mode = #tpu.pipeline_mode<synchronous>, transform_indices = @transform_9, window_bounds = array<i64: 1, 128>}, {pipeline_mode = #tpu.pipeline_mode<synchronous>, transform_indices = @transform_10, window_bounds = array<i64: 128, 128>}, {pipeline_mode = #tpu.pipeline_mode<synchronous>, transform_indices = @transform_11, window_bounds = array<i64: 1, 128>}, {transform_indices = @transform_12, window_bounds = array<i64: 1, 8, 128>}]} {
    %c0 = arith.constant 0 : index
    %c0_0 = arith.constant 0 : index
    %c0_1 = arith.constant 0 : index
    %0 = vector.load %arg2[%c0, %c0_0, %c0_1] : memref<1x8x8xbf16, #tpu.memory_space<vmem>>, vector<1x8x8xbf16>
    %1 = vector.shape_cast %0 : vector<1x8x8xbf16> to vector<8x8xbf16>
    %c0_2 = arith.constant 0 : index
    %c0_3 = arith.constant 0 : index
    %c0_4 = arith.constant 0 : index
    %2 = vector.load %arg1[%c0_2, %c0_3, %c0_4] : memref<1x8x32xbf16, #tpu.memory_space<vmem>>, vector<1x8x32xbf16>
    %3 = vector.shape_cast %2 : vector<1x8x32xbf16> to vector<8x32xbf16>
    %c0_5 = arith.constant 0 : index
    %c0_6 = arith.constant 0 : index
    %4 = vector.load %arg3[%c0_5, %c0_6] : memref<32x128xbf16, #tpu.memory_space<vmem>>, vector<32x128xbf16>
    %cst = arith.constant dense<0.000000e+00> : vector<8x128xf32>
    %5 = tpu.matmul %3, %4, %cst {dimension_numbers = #tpu.dot_dimension_numbers<[1], [0], [0], [1], [0, 0, 1, 1], [], []>} : vector<8x32xbf16>, vector<32x128xbf16>, vector<8x128xf32> -> vector<8x128xf32>
    %6 = arith.truncf %5 : vector<8x128xf32> to vector<8x128xbf16>
    %cst_7 = arith.constant dense<0.000000e+00> : vector<8x128xf32>
    %7 = tpu.matmul %1, %6, %cst_7 {dimension_numbers = #tpu.dot_dimension_numbers<[1], [0], [0], [1], [0, 0, 1, 1], [], []>} : vector<8x8xbf16>, vector<8x128xbf16>, vector<8x128xf32> -> vector<8x128xf32>
    %c0_8 = arith.constant 0 : index
    %c0_9 = arith.constant 0 : index
    %8 = vector.load %arg4[%c0_8, %c0_9] : memref<1x128xf32, #tpu.memory_space<vmem>>, vector<1x128xf32>
    %9 = vector.broadcast %8 : vector<1x128xf32> to vector<8x128xf32>
    %10 = arith.addf %7, %9 : vector<8x128xf32>
    %cst_10 = arith.constant 0.000000e+00 : f32
    %11 = vector.broadcast %cst_10 : f32 to vector<8x128xf32>
    %12 = arith.maximumf %10, %11 : vector<8x128xf32>
    %13 = arith.truncf %12 : vector<8x128xf32> to vector<8x128xbf16>
    %c0_11 = arith.constant 0 : index
    %c0_12 = arith.constant 0 : index
    %14 = vector.load %arg5[%c0_11, %c0_12] : memref<128x128xbf16, #tpu.memory_space<vmem>>, vector<128x128xbf16>
    %cst_13 = arith.constant dense<0.000000e+00> : vector<8x128xf32>
    %15 = tpu.matmul %13, %14, %cst_13 {dimension_numbers = #tpu.dot_dimension_numbers<[1], [0], [0], [1], [0, 0, 1, 1], [], []>} : vector<8x128xbf16>, vector<128x128xbf16>, vector<8x128xf32> -> vector<8x128xf32>
    %16 = arith.truncf %15 : vector<8x128xf32> to vector<8x128xbf16>
    %cst_14 = arith.constant dense<0.000000e+00> : vector<8x128xf32>
    %17 = tpu.matmul %1, %16, %cst_14 {dimension_numbers = #tpu.dot_dimension_numbers<[1], [0], [0], [1], [0, 0, 1, 1], [], []>} : vector<8x8xbf16>, vector<8x128xbf16>, vector<8x128xf32> -> vector<8x128xf32>
    %c0_15 = arith.constant 0 : index
    %c0_16 = arith.constant 0 : index
    %18 = vector.load %arg6[%c0_15, %c0_16] : memref<1x128xf32, #tpu.memory_space<vmem>>, vector<1x128xf32>
    %19 = vector.broadcast %18 : vector<1x128xf32> to vector<8x128xf32>
    %20 = arith.addf %17, %19 : vector<8x128xf32>
    %cst_17 = arith.constant 0.000000e+00 : f32
    %21 = vector.broadcast %cst_17 : f32 to vector<8x128xf32>
    %22 = arith.maximumf %20, %21 : vector<8x128xf32>
    %23 = arith.truncf %22 : vector<8x128xf32> to vector<8x128xbf16>
    %c0_18 = arith.constant 0 : index
    %c0_19 = arith.constant 0 : index
    %24 = vector.load %arg7[%c0_18, %c0_19] : memref<128x128xbf16, #tpu.memory_space<vmem>>, vector<128x128xbf16>
    %cst_20 = arith.constant dense<0.000000e+00> : vector<8x128xf32>
    %25 = tpu.matmul %23, %24, %cst_20 {dimension_numbers = #tpu.dot_dimension_numbers<[1], [0], [0], [1], [0, 0, 1, 1], [], []>} : vector<8x128xbf16>, vector<128x128xbf16>, vector<8x128xf32> -> vector<8x128xf32>
    %26 = arith.truncf %25 : vector<8x128xf32> to vector<8x128xbf16>
    %cst_21 = arith.constant dense<0.000000e+00> : vector<8x128xf32>
    %27 = tpu.matmul %1, %26, %cst_21 {dimension_numbers = #tpu.dot_dimension_numbers<[1], [0], [0], [1], [0, 0, 1, 1], [], []>} : vector<8x8xbf16>, vector<8x128xbf16>, vector<8x128xf32> -> vector<8x128xf32>
    %c0_22 = arith.constant 0 : index
    %c0_23 = arith.constant 0 : index
    %28 = vector.load %arg8[%c0_22, %c0_23] : memref<1x128xf32, #tpu.memory_space<vmem>>, vector<1x128xf32>
    %29 = vector.broadcast %28 : vector<1x128xf32> to vector<8x128xf32>
    %30 = arith.addf %27, %29 : vector<8x128xf32>
    %cst_24 = arith.constant 0.000000e+00 : f32
    %31 = vector.broadcast %cst_24 : f32 to vector<8x128xf32>
    %32 = arith.maximumf %30, %31 : vector<8x128xf32>
    %33 = arith.truncf %32 : vector<8x128xf32> to vector<8x128xbf16>
    %c0_25 = arith.constant 0 : index
    %c0_26 = arith.constant 0 : index
    %34 = vector.load %arg9[%c0_25, %c0_26] : memref<128x128xbf16, #tpu.memory_space<vmem>>, vector<128x128xbf16>
    %cst_27 = arith.constant dense<0.000000e+00> : vector<8x128xf32>
    %35 = tpu.matmul %33, %34, %cst_27 {dimension_numbers = #tpu.dot_dimension_numbers<[1], [0], [0], [1], [0, 0, 1, 1], [], []>} : vector<8x128xbf16>, vector<128x128xbf16>, vector<8x128xf32> -> vector<8x128xf32>
    %36 = arith.truncf %35 : vector<8x128xf32> to vector<8x128xbf16>
    %cst_28 = arith.constant dense<0.000000e+00> : vector<8x128xf32>
    %37 = tpu.matmul %1, %36, %cst_28 {dimension_numbers = #tpu.dot_dimension_numbers<[1], [0], [0], [1], [0, 0, 1, 1], [], []>} : vector<8x8xbf16>, vector<8x128xbf16>, vector<8x128xf32> -> vector<8x128xf32>
    %c0_29 = arith.constant 0 : index
    %c0_30 = arith.constant 0 : index
    %38 = vector.load %arg10[%c0_29, %c0_30] : memref<1x128xf32, #tpu.memory_space<vmem>>, vector<1x128xf32>
    %39 = vector.broadcast %38 : vector<1x128xf32> to vector<8x128xf32>
    %40 = arith.addf %37, %39 : vector<8x128xf32>
    %cst_31 = arith.constant 0.000000e+00 : f32
    %41 = vector.broadcast %cst_31 : f32 to vector<8x128xf32>
    %42 = arith.maximumf %40, %41 : vector<8x128xf32>
    %43 = arith.truncf %42 : vector<8x128xf32> to vector<8x128xbf16>
    %c0_32 = arith.constant 0 : index
    %c0_33 = arith.constant 0 : index
    %44 = vector.load %arg11[%c0_32, %c0_33] : memref<128x128xbf16, #tpu.memory_space<vmem>>, vector<128x128xbf16>
    %cst_34 = arith.constant dense<0.000000e+00> : vector<8x128xf32>
    %45 = tpu.matmul %43, %44, %cst_34 {dimension_numbers = #tpu.dot_dimension_numbers<[1], [0], [0], [1], [0, 0, 1, 1], [], []>} : vector<8x128xbf16>, vector<128x128xbf16>, vector<8x128xf32> -> vector<8x128xf32>
    %c0_35 = arith.constant 0 : index
    %c0_36 = arith.constant 0 : index
    %46 = vector.load %arg12[%c0_35, %c0_36] : memref<1x128xf32, #tpu.memory_space<vmem>>, vector<1x128xf32>
    %47 = vector.broadcast %46 : vector<1x128xf32> to vector<8x128xf32>
    %48 = arith.addf %45, %47 : vector<8x128xf32>
    %cst_37 = arith.constant dense<0xFF800000> : vector<8xf32>
    %49 = vector.multi_reduction <maximumf>, %48, %cst_37 [1] : vector<8x128xf32> to vector<8xf32>
    %50 = vector.shape_cast %49 : vector<8xf32> to vector<8x1xf32>
    %51 = vector.broadcast %50 : vector<8x1xf32> to vector<8x128xf32>
    %52 = arith.subf %48, %51 : vector<8x128xf32>
    %53 = math.exp %52 : vector<8x128xf32>
    %cst_38 = arith.constant dense<0.000000e+00> : vector<8xf32>
    %54 = vector.multi_reduction <add>, %53, %cst_38 [1] : vector<8x128xf32> to vector<8xf32>
    %55 = vector.shape_cast %54 : vector<8xf32> to vector<8x1xf32>
    %56 = math.log %55 : vector<8x1xf32>
    %57 = vector.broadcast %56 : vector<8x1xf32> to vector<8x128xf32>
    %58 = arith.subf %52, %57 : vector<8x128xf32>
    %c0_39 = arith.constant 0 : index
    %c0_40 = arith.constant 0 : index
    %c0_41 = arith.constant 0 : index
    %59 = vector.load %arg13[%c0_39, %c0_40, %c0_41] : memref<1x8x128xf32, #tpu.memory_space<vmem>>, vector<1x8x128xf32>
    %60 = vector.shape_cast %59 : vector<1x8x128xf32> to vector<8x128xf32>
    %61 = vector.shape_cast %58 : vector<8x128xf32> to vector<1x8x128xf32>
    tpu.vector_store %arg13[%c0_39, %c0_40, %c0_41], %61 {strides = array<i32>} : memref<1x8x128xf32, #tpu.memory_space<vmem>>, vector<1x8x128xf32>,
    return
  }
  func.func @transform_0(%arg0: i32) -> (i32, i32, i32) {
    %c0_i32 = arith.constant 0 : i32
    %c0_i32_0 = arith.constant 0 : i32
    %c0_i32_1 = arith.constant 0 : i32
    return %arg0, %c0_i32, %c0_i32_0 : i32, i32, i32
  }
  func.func @transform_1(%arg0: i32) -> (i32, i32, i32) {
    %c0_i32 = arith.constant 0 : i32
    %c0_i32_0 = arith.constant 0 : i32
    %c0_i32_1 = arith.constant 0 : i32
    return %arg0, %c0_i32, %c0_i32_0 : i32, i32, i32
  }
  func.func @transform_2(%arg0: i32) -> (i32, i32) {
    %c0_i32 = arith.constant 0 : i32
    %c0_i32_0 = arith.constant 0 : i32
    %c0_i32_1 = arith.constant 0 : i32
    return %c0_i32, %c0_i32_0 : i32, i32
  }
  func.func @transform_3(%arg0: i32) -> (i32, i32) {
    %c0_i32 = arith.constant 0 : i32
    %c0_i32_0 = arith.constant 0 : i32
    %c0_i32_1 = arith.constant 0 : i32
    return %c0_i32, %c0_i32_0 : i32, i32
  }
  func.func @transform_4(%arg0: i32) -> (i32, i32) {
    %c0_i32 = arith.constant 0 : i32
    %c0_i32_0 = arith.constant 0 : i32
    %c0_i32_1 = arith.constant 0 : i32
    return %c0_i32, %c0_i32_0 : i32, i32
  }
  func.func @transform_5(%arg0: i32) -> (i32, i32) {
    %c0_i32 = arith.constant 0 : i32
    %c0_i32_0 = arith.constant 0 : i32
    %c0_i32_1 = arith.constant 0 : i32
    return %c0_i32, %c0_i32_0 : i32, i32
  }
  func.func @transform_6(%arg0: i32) -> (i32, i32) {
    %c0_i32 = arith.constant 0 : i32
    %c0_i32_0 = arith.constant 0 : i32
    %c0_i32_1 = arith.constant 0 : i32
    return %c0_i32, %c0_i32_0 : i32, i32
  }
  func.func @transform_7(%arg0: i32) -> (i32, i32) {
    %c0_i32 = arith.constant 0 : i32
    %c0_i32_0 = arith.constant 0 : i32
    %c0_i32_1 = arith.constant 0 : i32
    return %c0_i32, %c0_i32_0 : i32, i32
  }
  func.func @transform_8(%arg0: i32) -> (i32, i32) {
    %c0_i32 = arith.constant 0 : i32
    %c0_i32_0 = arith.constant 0 : i32
    %c0_i32_1 = arith.constant 0 : i32
    return %c0_i32, %c0_i32_0 : i32, i32
  }
  func.func @transform_9(%arg0: i32) -> (i32, i32) {
    %c0_i32 = arith.constant 0 : i32
    %c0_i32_0 = arith.constant 0 : i32
    %c0_i32_1 = arith.constant 0 : i32
    return %c0_i32, %c0_i32_0 : i32, i32
  }
  func.func @transform_10(%arg0: i32) -> (i32, i32) {
    %c0_i32 = arith.constant 0 : i32
    %c0_i32_0 = arith.constant 0 : i32
    %c0_i32_1 = arith.constant 0 : i32
    return %c0_i32, %c0_i32_0 : i32, i32
  }
  func.func @transform_11(%arg0: i32) -> (i32, i32) {
    %c0_i32 = arith.constant 0 : i32
    %c0_i32_0 = arith.constant 0 : i32
    %c0_i32_1 = arith.constant 0 : i32
    return %c0_i32, %c0_i32_0 : i32, i32
  }
  func.func @transform_12(%arg0: i32) -> (i32, i32, i32) {
    %c0_i32 = arith.constant 0 : i32
    %c0_i32_0 = arith.constant 0 : i32
    %c0_i32_1 = arith.constant 0 : i32
    return %arg0, %c0_i32, %c0_i32_0 : i32, i32, i32
  }
}

</mosaic_0001>

<llo_original>
// kernel: tpu_custom_call.1
$region0: #{tpu_custom_call.1}
  #allocation0 [shape = 'u32[]', space=smem, size = 0x4, offset = 0x4, fixed_abs, tag = 'smem constant byte address 0x4 - core index']
  #allocation1 [shape = 'u32[144,128]{1,0:T(1,128)}', space=vmem, size = 0x12000, scoped, tag = 'internal scratch']
  %s0 = inlined_call_operand.hbm [shape: bf16[4,8,32], index: 0, kind: input, shape index: {}]
  %s1 = inlined_call_operand.hbm [shape: bf16[4,8,8], index: 1, kind: input, shape index: {}]
  %s2 = inlined_call_operand.hbm [shape: bf16[32,128], index: 2, kind: input, shape index: {}]
  %s3 = inlined_call_operand.vmem [shape: f32[1,128], index: 3, kind: input, shape index: {}]
  %s4 = inlined_call_operand.hbm [shape: bf16[128,128], index: 4, kind: input, shape index: {}]
  %s5 = inlined_call_operand.vmem [shape: f32[1,128], index: 5, kind: input, shape index: {}]
  %s6 = inlined_call_operand.hbm [shape: bf16[128,128], index: 6, kind: input, shape index: {}]
  %s7 = inlined_call_operand.vmem [shape: f32[1,128], index: 7, kind: input, shape index: {}]
  %s8 = inlined_call_operand.hbm [shape: bf16[128,128], index: 8, kind: input, shape index: {}]
  %s9 = inlined_call_operand.vmem [shape: f32[1,128], index: 9, kind: input, shape index: {}]
  %s10 = inlined_call_operand.hbm [shape: bf16[128,128], index: 10, kind: input, shape index: {}]
  %s11 = inlined_call_operand.vmem [shape: f32[1,128], index: 11, kind: input, shape index: {}]
  %s12 = inlined_call_operand.hbm [shape: f32[4,8,128], index: 12, kind: output, shape index: {}]
  %s13 = sld [smem:[#allocation0]]
  $region109: #{tpu_custom_call.1} parent=0
    _
  %s15 = ssub.s32 1, %s13
  %s16 = scalar_select 0, %s15, %s13
  $region1: #{tpu_custom_call.1} parent=0
    #allocation2 [shape = 'u8[4096]{0}', space=vmem, size = 0x1000, scoped, tag = 'input window, operand 0']
    #allocation3 [shape = 's32[2]{0}', space=sflag, size = 0x8, scoped, tag = 'scoped memory for tpu_custom_call.1']
    #allocation4 [shape = 's32[2]{0}', space=sflag, size = 0x8, scoped, tag = 'scoped memory for tpu_custom_call.1']
    #allocation5 [shape = 'u8[4096]{0}', space=vmem, size = 0x1000, scoped, tag = 'input window, operand 1']
    #allocation6 [shape = 's32[2]{0}', space=sflag, size = 0x8, scoped, tag = 'scoped memory for tpu_custom_call.1']
    #allocation7 [shape = 'u8[8192]{0}', space=vmem, size = 0x2000, scoped, tag = 'input window, operand 2, single buffered']
    #allocation8 [shape = 'u8[32768]{0}', space=vmem, size = 0x8000, scoped, tag = 'input window, operand 4, single buffered']
    #allocation9 [shape = 's32[1]{0}', space=sflag, size = 0x4, scoped, tag = 'scoped memory for tpu_custom_call.1']
    #allocation10 [shape = 'u8[32768]{0}', space=vmem, size = 0x8000, scoped, tag = 'input window, operand 6, single buffered']
    #allocation11 [shape = 'u8[32768]{0}', space=vmem, size = 0x8000, scoped, tag = 'input window, operand 8, single buffered']
    #allocation12 [shape = 's32[1]{0}', space=sflag, size = 0x4, scoped, tag = 'scoped memory for tpu_custom_call.1']
    #allocation13 [shape = 'u8[32768]{0}', space=vmem, size = 0x8000, scoped, tag = 'input window, operand 10, single buffered']
    #allocation14 [shape = 'u8[8192]{0}', space=vmem, size = 0x2000, scoped, tag = 'output window, operand 0']
    %17 = vsyncpa [#allocation3], 0
    %s18 = scalar_lea.sflag [#allocation3], 1
    %19 = vsyncpa %s18, 0
    %20 = vsyncpa [#allocation6], 0
    %s21 = scalar_lea.sflag [#allocation6], 1
    %22 = vsyncpa %s21, 0
    %23 = vsyncpa [#allocation9], 0
    %24 = vsyncpa [#allocation12], 0
    %25 = vsyncpa [#allocation4], 0
    %s26 = scalar_lea.sflag [#allocation4], 1
    %27 = vsyncpa %s26, 0
    loop: start=0, step=1, limit=6
    $region2: #{tpu_custom_call.1} parent=1 // loop_pre_header
      _
    $region3: #{tpu_custom_call.1} parent=1 // loop_header
      %s29 = sphi 0, %s33
      %p30 = scmp.ge.s32.totalorder %s29, 6
      %s39 = sphi 0, %s41
      %s42 = sphi 0, %s39
      %s43 = sphi 0, %s42
      %s59 = sphi 0, %s43
      %s65 = sphi 0, %s67
      %s68 = sphi 0, %s65
      %s69 = sphi 0, %s68
      %s85 = sphi 0, %s69
      %s89 = sphi 0, %s89
      %s91 = sphi 0, %s89
      %s92 = sphi 0, %s91
      %s106 = sphi 0, %s92
      %s110 = sphi 0, %s110
      %s112 = sphi 0, %s110
      %s113 = sphi 0, %s112
      %s127 = sphi 0, %s113
      %s131 = sphi 0, %s131
      %s133 = sphi 0, %s131
      %s134 = sphi 0, %s133
      %s148 = sphi 0, %s134
      %s152 = sphi 0, %s152
      %s154 = sphi 0, %s152
      %s155 = sphi 0, %s154
      %s169 = sphi 0, %s155
      %s173 = sphi 0, %s173
      %s175 = sphi 0, %s173
      %s176 = sphi 0, %s175
      %s190 = sphi 0, %s176
      %s194 = sphi 0, %s194
      %s196 = sphi 0, %s194
      %s197 = sphi 0, %s196
      %s211 = sphi 0, %s197
      %s215 = sphi 0, %s215
      %s217 = sphi 0, %s215
      %s218 = sphi 0, %s217
      %s232 = sphi 0, %s218
      %s236 = sphi 0, %s236
      %s238 = sphi 0, %s236
      %s239 = sphi 0, %s238
      %s253 = sphi 0, %s239
      %s257 = sphi 0, %s257
      %s259 = sphi 0, %s257
      %s260 = sphi 0, %s259
      %s274 = sphi 0, %s260
      %s278 = sphi 0, %s278
      %s280 = sphi 0, %s278
      %s281 = sphi 0, %s280
      %s295 = sphi 0, %s281
      %s301 = sphi 0, %s303
      %s304 = sphi 0, %s301
      %s305 = sphi 0, %s304
      %s321 = sphi 0, %s305
    $region4: #{tpu_custom_call.1} parent=1 // loop_header_branch
      %32 = sbr.rel (%p30) target = $region8
    $region5: #{tpu_custom_call.1} parent=1 // loop_body
      %s34 = ssub.s32 %s29, 1
      %s35 = ssub.s32 %s29, 2
      %s36 = sadd.s32 %s29, 1
      %s37 = ssub.s32 %s29, %s36
      %p38 = scmp.eq.s32.totalorder %s37, 0
      %s40 = sadd.s32 %s39, 1
      %s41 = scalar_select %p38, %s39, %s40
      %p44 = pneg %p38
      %p45 = scmp.eq.s32.totalorder %s29, 3
      %p46 = por %p44, %p45
      %p47 = scmp.ne.s32.totalorder %s39, %s42
      %p48 = scmp.eq.s32.totalorder %s29, 0
      %p49 = por %p47, %p48
      %p50 = scmp.ne.s32.totalorder %s39, %s42
      %p51 = scmp.eq.s32.totalorder %s34, 3
      %p52 = por %p50, %p51
      %p53 = scmp.ne.s32.totalorder %s42, %s43
      %p54 = scmp.eq.s32.totalorder %s34, 0
      %p55 = por %p53, %p54
      %p56 = scmp.ne.s32.totalorder %s42, %s43
      %p57 = scmp.eq.s32.totalorder %s35, 3
      %p58 = por %p56, %p57
      %p60 = scmp.ne.s32.totalorder %s43, %s59
      %p61 = scmp.eq.s32.totalorder %s35, 0
      %p62 = por %p60, %p61
      %s63 = ssub.s32 %s29, %s36
      %p64 = scmp.eq.s32.totalorder %s63, 0
      %s66 = sadd.s32 %s65, 1
      %s67 = scalar_select %p64, %s65, %s66
      %p70 = pneg %p64
      %p71 = scmp.eq.s32.totalorder %s29, 3
      %p72 = por %p70, %p71
      %p73 = scmp.ne.s32.totalorder %s65, %s68
      %p74 = scmp.eq.s32.totalorder %s29, 0
      %p75 = por %p73, %p74
      %p76 = scmp.ne.s32.totalorder %s65, %s68
      %p77 = scmp.eq.s32.totalorder %s34, 3
      %p78 = por %p76, %p77
      %p79 = scmp.ne.s32.totalorder %s68, %s69
      %p80 = scmp.eq.s32.totalorder %s34, 0
      %p81 = por %p79, %p80
      %p82 = scmp.ne.s32.totalorder %s68, %s69
      %p83 = scmp.eq.s32.totalorder %s35, 3
      %p84 = por %p82, %p83
      %p86 = scmp.ne.s32.totalorder %s69, %s85
      %p87 = scmp.eq.s32.totalorder %s35, 0
      %p88 = por %p86, %p87
      %s90 = sadd.s32 %s89, 1
      %p93 = scmp.eq.s32.totalorder %s29, 3
      %p94 = scmp.ne.s32.totalorder %s89, %s91
      %p95 = scmp.eq.s32.totalorder %s29, 0
      %p96 = por %p94, %p95
      %p97 = scmp.ne.s32.totalorder %s89, %s91
      %p98 = scmp.eq.s32.totalorder %s34, 3
      %p99 = por %p97, %p98
      %p100 = scmp.ne.s32.totalorder %s91, %s92
      %p101 = scmp.eq.s32.totalorder %s34, 0
      %p102 = por %p100, %p101
      %p103 = scmp.ne.s32.totalorder %s91, %s92
      %p104 = scmp.eq.s32.totalorder %s35, 3
      %p105 = por %p103, %p104
      %p107 = scmp.ne.s32.totalorder %s92, %s106
      %p108 = scmp.eq.s32.totalorder %s35, 0
      %p109 = por %p107, %p108
      %s111 = sadd.s32 %s110, 1
      %p114 = scmp.eq.s32.totalorder %s29, 3
      %p115 = scmp.ne.s32.totalorder %s110, %s112
      %p116 = scmp.eq.s32.totalorder %s29, 0
      %p117 = por %p115, %p116
      %p118 = scmp.ne.s32.totalorder %s110, %s112
      %p119 = scmp.eq.s32.totalorder %s34, 3
      %p120 = por %p118, %p119
      %p121 = scmp.ne.s32.totalorder %s112, %s113
      %p122 = scmp.eq.s32.totalorder %s34, 0
      %p123 = por %p121, %p122
      %p124 = scmp.ne.s32.totalorder %s112, %s113
      %p125 = scmp.eq.s32.totalorder %s35, 3
      %p126 = por %p124, %p125
      %p128 = scmp.ne.s32.totalorder %s113, %s127
      %p129 = scmp.eq.s32.totalorder %s35, 0
      %p130 = por %p128, %p129
      %s132 = sadd.s32 %s131, 1
      %p135 = scmp.eq.s32.totalorder %s29, 3
      %p136 = scmp.ne.s32.totalorder %s131, %s133
      %p137 = scmp.eq.s32.totalorder %s29, 0
      %p138 = por %p136, %p137
      %p139 = scmp.ne.s32.totalorder %s131, %s133
      %p140 = scmp.eq.s32.totalorder %s34, 3
      %p141 = por %p139, %p140
      %p142 = scmp.ne.s32.totalorder %s133, %s134
      %p143 = scmp.eq.s32.totalorder %s34, 0
      %p144 = por %p142, %p143
      %p145 = scmp.ne.s32.totalorder %s133, %s134
      %p146 = scmp.eq.s32.totalorder %s35, 3
      %p147 = por %p145, %p146
      %p149 = scmp.ne.s32.totalorder %s134, %s148
      %p150 = scmp.eq.s32.totalorder %s35, 0
      %p151 = por %p149, %p150
      %s153 = sadd.s32 %s152, 1
      %p156 = scmp.eq.s32.totalorder %s29, 3
      %p157 = scmp.ne.s32.totalorder %s152, %s154
      %p158 = scmp.eq.s32.totalorder %s29, 0
      %p159 = por %p157, %p158
      %p160 = scmp.ne.s32.totalorder %s152, %s154
      %p161 = scmp.eq.s32.totalorder %s34, 3
      %p162 = por %p160, %p161
      %p163 = scmp.ne.s32.totalorder %s154, %s155
      %p164 = scmp.eq.s32.totalorder %s34, 0
      %p165 = por %p163, %p164
      %p166 = scmp.ne.s32.totalorder %s154, %s155
      %p167 = scmp.eq.s32.totalorder %s35, 3
      %p168 = por %p166, %p167
      %p170 = scmp.ne.s32.totalorder %s155, %s169
      %p171 = scmp.eq.s32.totalorder %s35, 0
      %p172 = por %p170, %p171
      %s174 = sadd.s32 %s173, 1
      %p177 = scmp.eq.s32.totalorder %s29, 3
      %p178 = scmp.ne.s32.totalorder %s173, %s175
      %p179 = scmp.eq.s32.totalorder %s29, 0
      %p180 = por %p178, %p179
      %p181 = scmp.ne.s32.totalorder %s173, %s175
      %p182 = scmp.eq.s32.totalorder %s34, 3
      %p183 = por %p181, %p182
      %p184 = scmp.ne.s32.totalorder %s175, %s176
      %p185 = scmp.eq.s32.totalorder %s34, 0
      %p186 = por %p184, %p185
      %p187 = scmp.ne.s32.totalorder %s175, %s176
      %p188 = scmp.eq.s32.totalorder %s35, 3
      %p189 = por %p187, %p188
      %p191 = scmp.ne.s32.totalorder %s176, %s190
      %p192 = scmp.eq.s32.totalorder %s35, 0
      %p193 = por %p191, %p192
      %s195 = sadd.s32 %s194, 1
      %p198 = scmp.eq.s32.totalorder %s29, 3
      %p199 = scmp.ne.s32.totalorder %s194, %s196
      %p200 = scmp.eq.s32.totalorder %s29, 0
      %p201 = por %p199, %p200
      %p202 = scmp.ne.s32.totalorder %s194, %s196
      %p203 = scmp.eq.s32.totalorder %s34, 3
      %p204 = por %p202, %p203
      %p205 = scmp.ne.s32.totalorder %s196, %s197
      %p206 = scmp.eq.s32.totalorder %s34, 0
      %p207 = por %p205, %p206
      %p208 = scmp.ne.s32.totalorder %s196, %s197
      %p209 = scmp.eq.s32.totalorder %s35, 3
      %p210 = por %p208, %p209
      %p212 = scmp.ne.s32.totalorder %s197, %s211
      %p213 = scmp.eq.s32.totalorder %s35, 0
      %p214 = por %p212, %p213
      %s216 = sadd.s32 %s215, 1
      %p219 = scmp.eq.s32.totalorder %s29, 3
      %p220 = scmp.ne.s32.totalorder %s215, %s217
      %p221 = scmp.eq.s32.totalorder %s29, 0
      %p222 = por %p220, %p221
      %p223 = scmp.ne.s32.totalorder %s215, %s217
      %p224 = scmp.eq.s32.totalorder %s34, 3
      %p225 = por %p223, %p224
      %p226 = scmp.ne.s32.totalorder %s217, %s218
      %p227 = scmp.eq.s32.totalorder %s34, 0
      %p228 = por %p226, %p227
      %p229 = scmp.ne.s32.totalorder %s217, %s218
      %p230 = scmp.eq.s32.totalorder %s35, 3
      %p231 = por %p229, %p230
      %p233 = scmp.ne.s32.totalorder %s218, %s232
      %p234 = scmp.eq.s32.totalorder %s35, 0
      %p235 = por %p233, %p234
      %s237 = sadd.s32 %s236, 1
      %p240 = scmp.eq.s32.totalorder %s29, 3
      %p241 = scmp.ne.s32.totalorder %s236, %s238
      %p242 = scmp.eq.s32.totalorder %s29, 0
      %p243 = por %p241, %p242
      %p244 = scmp.ne.s32.totalorder %s236, %s238
      %p245 = scmp.eq.s32.totalorder %s34, 3
      %p246 = por %p244, %p245
      %p247 = scmp.ne.s32.totalorder %s238, %s239
      %p248 = scmp.eq.s32.totalorder %s34, 0
      %p249 = por %p247, %p248
      %p250 = scmp.ne.s32.totalorder %s238, %s239
      %p251 = scmp.eq.s32.totalorder %s35, 3
      %p252 = por %p250, %p251
      %p254 = scmp.ne.s32.totalorder %s239, %s253
      %p255 = scmp.eq.s32.totalorder %s35, 0
      %p256 = por %p254, %p255
      %s258 = sadd.s32 %s257, 1
      %p261 = scmp.eq.s32.totalorder %s29, 3
      %p262 = scmp.ne.s32.totalorder %s257, %s259
      %p263 = scmp.eq.s32.totalorder %s29, 0
      %p264 = por %p262, %p263
      %p265 = scmp.ne.s32.totalorder %s257, %s259
      %p266 = scmp.eq.s32.totalorder %s34, 3
      %p267 = por %p265, %p266
      %p268 = scmp.ne.s32.totalorder %s259, %s260
      %p269 = scmp.eq.s32.totalorder %s34, 0
      %p270 = por %p268, %p269
      %p271 = scmp.ne.s32.totalorder %s259, %s260
      %p272 = scmp.eq.s32.totalorder %s35, 3
      %p273 = por %p271, %p272
      %p275 = scmp.ne.s32.totalorder %s260, %s274
      %p276 = scmp.eq.s32.totalorder %s35, 0
      %p277 = por %p275, %p276
      %s279 = sadd.s32 %s278, 1
      %p282 = scmp.eq.s32.totalorder %s29, 3
      %p283 = scmp.ne.s32.totalorder %s278, %s280
      %p284 = scmp.eq.s32.totalorder %s29, 0
      %p285 = por %p283, %p284
      %p286 = scmp.ne.s32.totalorder %s278, %s280
      %p287 = scmp.eq.s32.totalorder %s34, 3
      %p288 = por %p286, %p287
      %p289 = scmp.ne.s32.totalorder %s280, %s281
      %p290 = scmp.eq.s32.totalorder %s34, 0
      %p291 = por %p289, %p290
      %p292 = scmp.ne.s32.totalorder %s280, %s281
      %p293 = scmp.eq.s32.totalorder %s35, 3
      %p294 = por %p292, %p293
      %p296 = scmp.ne.s32.totalorder %s281, %s295
      %p297 = scmp.eq.s32.totalorder %s35, 0
      %p298 = por %p296, %p297
      %s299 = ssub.s32 %s29, %s36
      %p300 = scmp.eq.s32.totalorder %s299, 0
      %s302 = sadd.s32 %s301, 1
      %s303 = scalar_select %p300, %s301, %s302
      %p306 = pneg %p300
      %p307 = scmp.eq.s32.totalorder %s29, 3
      %p308 = por %p306, %p307
      %p309 = scmp.ne.s32.totalorder %s301, %s304
      %p310 = scmp.eq.s32.totalorder %s29, 0
      %p311 = por %p309, %p310
      %p312 = scmp.ne.s32.totalorder %s301, %s304
      %p313 = scmp.eq.s32.totalorder %s34, 3
      %p314 = por %p312, %p313
      %p315 = scmp.ne.s32.totalorder %s304, %s305
      %p316 = scmp.eq.s32.totalorder %s34, 0
      %p317 = por %p315, %p316
      %p318 = scmp.ne.s32.totalorder %s304, %s305
      %p319 = scmp.eq.s32.totalorder %s35, 3
      %p320 = por %p318, %p319
      %p322 = scmp.ne.s32.totalorder %s305, %s321
      %p323 = scmp.eq.s32.totalorder %s35, 0
      %p324 = por %p322, %p323
      %p325 = scmp.le.s32.totalorder 1, %s29
      %p326 = scmp.lt.s32.totalorder %s29, 5
      %p327 = pnand %p325, %p326
      %p328 = pneg %p327
      // Predicated region
      $region9: #{tpu_custom_call.1} parent=5 // pred_check
        _
      $region10: #{tpu_custom_call.1} parent=5 // pred_check_branch
        %330 = sbr.rel (%p327) target = $region12
      $region11: #{tpu_custom_call.1} parent=5 // pred_region
        %s331 = ssub.s32 %s29, 1
        // Predicated region
        $region13: #{tpu_custom_call.1} parent=11 // pred_check
          %p332 = pneg %p102
        $region14: #{tpu_custom_call.1} parent=11 // pred_check_branch
          %334 = sbr.rel (%p332) target = $region16
        $region15: #{tpu_custom_call.1} parent=11 // pred_region
          %s336 = ssub.s32 256, 256
          %337 = vsyncadd [#allocation6], %s336
          %s338 = sshll.u32 [#allocation7], 4
          %s339 = int_to_ptr.vmem [resolvable:$true] %s338
          %344 = dma.hbm_to_vmem [thread:$0]  %s2, 256, %s339, [#allocation6], 64, 64, 4
        $region16: #{tpu_custom_call.1} parent=11 // pred_fallthru
          _
        // Predicated region
        $region17: #{tpu_custom_call.1} parent=11 // pred_check
          %p345 = pneg %p123
        $region18: #{tpu_custom_call.1} parent=11 // pred_check_branch
          %347 = sbr.rel (%p345) target = $region20
        $region19: #{tpu_custom_call.1} parent=11 // pred_region
          _
        $region20: #{tpu_custom_call.1} parent=11 // pred_fallthru
          _
        // Predicated region
        $region21: #{tpu_custom_call.1} parent=11 // pred_check
          %p348 = pneg %p144
        $region22: #{tpu_custom_call.1} parent=11 // pred_check_branch
          %350 = sbr.rel (%p348) target = $region24
        $region23: #{tpu_custom_call.1} parent=11 // pred_region
          %s352 = ssub.s32 1024, 1024
          %353 = vsyncadd [#allocation9], %s352
          %s354 = sshll.u32 [#allocation8], 4
          %s355 = int_to_ptr.vmem [resolvable:$true] %s354
          %360 = dma.hbm_to_vmem [thread:$0]  %s4, 1024, %s355, [#allocation9], 64, 64, 4
        $region24: #{tpu_custom_call.1} parent=11 // pred_fallthru
          _
        // Predicated region
        $region25: #{tpu_custom_call.1} parent=11 // pred_check
          %p361 = pneg %p165
        $region26: #{tpu_custom_call.1} parent=11 // pred_check_branch
          %363 = sbr.rel (%p361) target = $region28
        $region27: #{tpu_custom_call.1} parent=11 // pred_region
          _
        $region28: #{tpu_custom_call.1} parent=11 // pred_fallthru
          _
        // Predicated region
        $region29: #{tpu_custom_call.1} parent=11 // pred_check
          %p364 = pneg %p186
        $region30: #{tpu_custom_call.1} parent=11 // pred_check_branch
          %366 = sbr.rel (%p364) target = $region32
        $region31: #{tpu_custom_call.1} parent=11 // pred_region
          %s368 = ssub.s32 1024, 1024
          %369 = vsyncadd [#allocation9], %s368
          %s370 = sshll.u32 [#allocation10], 4
          %s371 = int_to_ptr.vmem [resolvable:$true] %s370
          %376 = dma.hbm_to_vmem [thread:$0]  %s6, 1024, %s371, [#allocation9], 64, 64, 4
        $region32: #{tpu_custom_call.1} parent=11 // pred_fallthru
          _
        // Predicated region
        $region33: #{tpu_custom_call.1} parent=11 // pred_check
          %p377 = pneg %p207
        $region34: #{tpu_custom_call.1} parent=11 // pred_check_branch
          %379 = sbr.rel (%p377) target = $region36
        $region35: #{tpu_custom_call.1} parent=11 // pred_region
          _
        $region36: #{tpu_custom_call.1} parent=11 // pred_fallthru
          _
        // Predicated region
        $region37: #{tpu_custom_call.1} parent=11 // pred_check
          %p380 = pneg %p228
        $region38: #{tpu_custom_call.1} parent=11 // pred_check_branch
          %382 = sbr.rel (%p380) target = $region40
        $region39: #{tpu_custom_call.1} parent=11 // pred_region
          %s384 = ssub.s32 1024, 1024
          %385 = vsyncadd [#allocation12], %s384
          %s386 = sshll.u32 [#allocation11], 4
          %s387 = int_to_ptr.vmem [resolvable:$true] %s386
          %392 = dma.hbm_to_vmem [thread:$0]  %s8, 1024, %s387, [#allocation12], 64, 64, 4
        $region40: #{tpu_custom_call.1} parent=11 // pred_fallthru
          _
        // Predicated region
        $region41: #{tpu_custom_call.1} parent=11 // pred_check
          %p393 = pneg %p249
        $region42: #{tpu_custom_call.1} parent=11 // pred_check_branch
          %395 = sbr.rel (%p393) target = $region44
        $region43: #{tpu_custom_call.1} parent=11 // pred_region
          _
        $region44: #{tpu_custom_call.1} parent=11 // pred_fallthru
          _
        // Predicated region
        $region45: #{tpu_custom_call.1} parent=11 // pred_check
          %p396 = pneg %p270
        $region46: #{tpu_custom_call.1} parent=11 // pred_check_branch
          %398 = sbr.rel (%p396) target = $region48
        $region47: #{tpu_custom_call.1} parent=11 // pred_region
          %s400 = ssub.s32 1024, 1024
          %401 = vsyncadd [#allocation12], %s400
          %s402 = sshll.u32 [#allocation13], 4
          %s403 = int_to_ptr.vmem [resolvable:$true] %s402
          %408 = dma.hbm_to_vmem [thread:$0]  %s10, 1024, %s403, [#allocation12], 64, 64, 4
        $region48: #{tpu_custom_call.1} parent=11 // pred_fallthru
          _
        // Predicated region
        $region49: #{tpu_custom_call.1} parent=11 // pred_check
          %p409 = pneg %p291
        $region50: #{tpu_custom_call.1} parent=11 // pred_check_branch
          %411 = sbr.rel (%p409) target = $region52
        $region51: #{tpu_custom_call.1} parent=11 // pred_region
          _
        $region52: #{tpu_custom_call.1} parent=11 // pred_fallthru
          _
      $region12: #{tpu_custom_call.1} parent=5 // pred_fallthru
        _
      %p412 = scmp.lt.s32.totalorder %s29, 4
      // Predicated region
      $region53: #{tpu_custom_call.1} parent=5 // pred_check
        %p413 = pneg %p412
      $region54: #{tpu_custom_call.1} parent=5 // pred_check_branch
        %415 = sbr.rel (%p413) target = $region56
      $region55: #{tpu_custom_call.1} parent=5 // pred_region
        // Predicated region
        $region57: #{tpu_custom_call.1} parent=55 // pred_check
          %p416 = pneg %p49
        $region58: #{tpu_custom_call.1} parent=55 // pred_check_branch
          %418 = sbr.rel (%p416) target = $region60
        $region59: #{tpu_custom_call.1} parent=55 // pred_region
          %s419 = sand.u32 %s39, 1
          %s420 = scalar_lea.sflag [#allocation3], %s419
          %s421 = sand.u32 %s39, 1
          %s422 = smul.addr %s421, 4
          %s423 = scalar_lea.vmem [#allocation2], %s422
          %s425 = ssub.s32 64, 64
          %426 = vsyncadd %s420, %s425
          %s427 = smul.addr %s29, 64
          %s428 = scalar_lea.hbm %s0, %s427
          %s430 = sshll.u32 %s423, 4
          %s431 = int_to_ptr.vmem [resolvable:$true] %s430
          %433 = dma.hbm_to_vmem [thread:$0]  %s428, 64, %s431, %s420
        $region60: #{tpu_custom_call.1} parent=55 // pred_fallthru
          _
        // Predicated region
        $region61: #{tpu_custom_call.1} parent=55 // pred_check
          %p434 = pneg %p75
        $region62: #{tpu_custom_call.1} parent=55 // pred_check_branch
          %436 = sbr.rel (%p434) target = $region64
        $region63: #{tpu_custom_call.1} parent=55 // pred_region
          %s437 = sand.u32 %s29, 1
          %s438 = scalar_lea.sflag [#allocation6], %s437
          %s439 = sand.u32 %s65, 1
          %s440 = smul.addr %s439, 4
          %s441 = scalar_lea.vmem [#allocation5], %s440
          %s443 = ssub.s32 64, 64
          %444 = vsyncadd %s438, %s443
          %s445 = smul.addr %s29, 64
          %s446 = scalar_lea.hbm %s1, %s445
          %s448 = sshll.u32 %s441, 4
          %s449 = int_to_ptr.vmem [resolvable:$true] %s448
          %451 = dma.hbm_to_vmem [thread:$0]  %s446, 64, %s449, %s438
        $region64: #{tpu_custom_call.1} parent=55 // pred_fallthru
          _
      $region56: #{tpu_custom_call.1} parent=5 // pred_fallthru
        _
      %p452 = scmp.le.s32.totalorder 1, %s29
      %p453 = scmp.lt.s32.totalorder %s29, 5
      %p454 = pnand %p452, %p453
      %p455 = pneg %p454
      // Predicated region
      $region65: #{tpu_custom_call.1} parent=5 // pred_check
        _
      $region66: #{tpu_custom_call.1} parent=5 // pred_check_branch
        %457 = sbr.rel (%p454) target = $region68
      $region67: #{tpu_custom_call.1} parent=5 // pred_region
        %s458 = ssub.s32 %s29, 1
        %s459 = sand.u32 %s42, 1
        %s460 = scalar_lea.sflag [#allocation3], %s459
        %s461 = sand.u32 %s42, 1
        %s462 = smul.addr %s461, 4
        %s463 = scalar_lea.vmem [#allocation2], %s462
        // Predicated region
        $region69: #{tpu_custom_call.1} parent=67 // pred_check
          %p464 = pneg %p55
        $region70: #{tpu_custom_call.1} parent=67 // pred_check_branch
          %466 = sbr.rel (%p464) target = $region72
        $region71: #{tpu_custom_call.1} parent=67 // pred_region
          %467 = dma.done %s460, 64
        $region72: #{tpu_custom_call.1} parent=67 // pred_fallthru
          _
        %s468 = sand.u32 %s34, 1
        %s469 = scalar_lea.sflag [#allocation6], %s468
        %s470 = sand.u32 %s68, 1
        %s471 = smul.addr %s470, 4
        %s472 = scalar_lea.vmem [#allocation5], %s471
        // Predicated region
        $region73: #{tpu_custom_call.1} parent=67 // pred_check
          %p473 = pneg %p81
        $region74: #{tpu_custom_call.1} parent=67 // pred_check_branch
          %475 = sbr.rel (%p473) target = $region76
        $region75: #{tpu_custom_call.1} parent=67 // pred_region
          %476 = dma.done %s469, 64
        $region76: #{tpu_custom_call.1} parent=67 // pred_fallthru
          _
        // Predicated region
        $region77: #{tpu_custom_call.1} parent=67 // pred_check
          %p477 = pneg %p102
        $region78: #{tpu_custom_call.1} parent=67 // pred_check_branch
          %479 = sbr.rel (%p477) target = $region80
        $region79: #{tpu_custom_call.1} parent=67 // pred_region
          %480 = dma.done [#allocation6], 256
        $region80: #{tpu_custom_call.1} parent=67 // pred_fallthru
          _
        // Predicated region
        $region81: #{tpu_custom_call.1} parent=67 // pred_check
          %p481 = pneg %p144
        $region82: #{tpu_custom_call.1} parent=67 // pred_check_branch
          %483 = sbr.rel (%p481) target = $region84
        $region83: #{tpu_custom_call.1} parent=67 // pred_region
          %484 = dma.done [#allocation9], 1024
        $region84: #{tpu_custom_call.1} parent=67 // pred_fallthru
          _
        // Predicated region
        $region85: #{tpu_custom_call.1} parent=67 // pred_check
          %p485 = pneg %p186
        $region86: #{tpu_custom_call.1} parent=67 // pred_check_branch
          %487 = sbr.rel (%p485) target = $region88
        $region87: #{tpu_custom_call.1} parent=67 // pred_region
          %488 = dma.done [#allocation9], 1024
        $region88: #{tpu_custom_call.1} parent=67 // pred_fallthru
          _
        // Predicated region
        $region89: #{tpu_custom_call.1} parent=67 // pred_check
          %p489 = pneg %p228
        $region90: #{tpu_custom_call.1} parent=67 // pred_check_branch
          %491 = sbr.rel (%p489) target = $region92
        $region91: #{tpu_custom_call.1} parent=67 // pred_region
          %492 = dma.done [#allocation12], 1024
        $region92: #{tpu_custom_call.1} parent=67 // pred_fallthru
          _
        // Predicated region
        $region93: #{tpu_custom_call.1} parent=67 // pred_check
          %p493 = pneg %p270
        $region94: #{tpu_custom_call.1} parent=67 // pred_check_branch
          %495 = sbr.rel (%p493) target = $region96
        $region95: #{tpu_custom_call.1} parent=67 // pred_region
          %496 = dma.done [#allocation12], 1024
        $region96: #{tpu_custom_call.1} parent=67 // pred_fallthru
          _
        %s497 = sand.u32 %s42, 1
        %s498 = scalar_lea.sflag [#allocation3], %s497
        %s499 = sand.u32 %s42, 1
        %s500 = smul.addr %s499, 4
        %s501 = scalar_lea.vmem [#allocation2], %s500
        %p502 = pneg %p55
        %p503 = pneg %p52
        %s504 = sand.u32 %s34, 1
        %s505 = scalar_lea.sflag [#allocation6], %s504
        %s506 = sand.u32 %s68, 1
        %s507 = smul.addr %s506, 4
        %s508 = scalar_lea.vmem [#allocation5], %s507
        %p509 = pneg %p81
        %p510 = pneg %p78
        %p511 = pneg %p102
        %p512 = pneg %p99
        %p513 = pneg %p123
        %p514 = pneg %p120
        %p515 = pneg %p144
        %p516 = pneg %p141
        %p517 = pneg %p165
        %p518 = pneg %p162
        %p519 = pneg %p186
        %p520 = pneg %p183
        %p521 = pneg %p207
        %p522 = pneg %p204
        %p523 = pneg %p228
        %p524 = pneg %p225
        %p525 = pneg %p249
        %p526 = pneg %p246
        %p527 = pneg %p270
        %p528 = pneg %p267
        %p529 = pneg %p291
        %p530 = pneg %p288
        %p531 = pneg %p317
        %p532 = pneg %p314
        %s533 = sand.u32 %s304, 1
        %s534 = scalar_lea.sflag [#allocation4], %s533
        %s535 = sand.u32 %s304, 1
        %s536 = smul.addr %s535, 8
        %s537 = scalar_lea.vmem [#allocation14], %s536
        %v539 = vld [vmem:[%s472] sm:$0xf]
        %v540 = vld [vmem:[%s463] sm:$0xf]
        %v541 = vld [vmem:[#allocation7] sm:$0xf]
        %v542 = vld [vmem:[#allocation7 + $0x4] sm:$0xf]
        %v543 = vld [vmem:[#allocation7 + $0x8] sm:$0xf]
        %v544 = vld [vmem:[#allocation7 + $0xc] sm:$0xf]
        %v549 = vunpack.c.l.b16 %v541
        %v550 = vunpack.c.l.b16 %v542
        %v551 = vunpack.c.l.b16 %v543
        %v552 = vunpack.c.l.b16 %v544
        %v553 = vpack.c.b16 %v550, %v549
        %v554 = vpack.c.b16 %v552, %v551
        %vm557 = vcmask 261120
        %v559 = vsel %vm557, %v540, 0
        %561 = vmatprep.subr.bf16.mxu0 0
        %562 = vmatpush1.bf16.msra.mxu0 %v553
        %563 = vmatprep.subr.bf16.mxu0 0
        %564 = vmatpush1.bf16.msra.mxu0 %v554
        %565 = vmatprep.subr.bf16.mxu0 0
        %566 = vmatpush1.bf16.msra.mxu0 0
        %567 = vmatprep.subr.bf16.mxu0 0
        %568 = vmatpush1.bf16.msra.mxu0 0
        %569 = vmatprep.subr.bf16.mxu0 0
        %570 = vmatpush1.bf16.msra.mxu0 0
        %571 = vmatprep.subr.bf16.mxu0 0
        %572 = vmatpush1.bf16.msra.mxu0 0
        %573 = vmatprep.subr.bf16.mxu0 0
        %574 = vmatpush1.bf16.msra.mxu0 0
        %575 = vmatprep.subr.bf16.mxu0 0
        %576 = vmatpush1.bf16.msra.mxu0 0
        %577 = vmatprep.subr.bf16.mxu0 0
        %578 = vmatpush1.bf16.msra.mxu0 0
        %579 = vmatprep.subr.bf16.mxu0 0
        %580 = vmatpush1.bf16.msra.mxu0 0
        %581 = vmatprep.subr.bf16.mxu0 0
        %582 = vmatpush1.bf16.msra.mxu0 0
        %583 = vmatprep.subr.bf16.mxu0 0
        %584 = vmatpush1.bf16.msra.mxu0 0
        %585 = vmatprep.subr.bf16.mxu0 0
        %586 = vmatpush1.bf16.msra.mxu0 0
        %587 = vmatprep.subr.bf16.mxu0 0
        %588 = vmatpush1.bf16.msra.mxu0 0
        %589 = vmatprep.subr.bf16.mxu0 0
        %590 = vmatpush1.bf16.msra.mxu0 0
        %591 = vmatprep.subr.bf16.mxu0 0
        %592 = vmatpush1.bf16.msra.mxu0 0
        %593 = vmatprep.mubr.bf16.mxu0 0
        %594 = vmatmul.mubr.bf16.gmra.mrb[0].mxu0 %v559
        %v595 = vpop.f32.mrb[0].mxu0
        %v596 = vadd.f32 0.0, %v595
        %v597 = vpop.f32.mrb[0].mxu0
        %v598 = vpop.f32.mrb[0].mxu0
        %v599 = vpop.f32.mrb[0].mxu0
        %600 = vdwg.mxu0
        %v601 = vpack.c.bf16 %v596, %v596
        %v602 = vld [vmem:[%s3] sm:$0x1]
        %v604 = vlaneseq
        %v605 = vshrl.u32 %v604, 7
        %v606 = vsub.s32 0, %v605
        %v607 = vrot.slane %v602, %v606
        %vm609 = vcmask 64512
        %v611 = vsel %vm609, %v539, 0
        %vm613 = vcmask 1043456
        %v615 = vsel %vm613, %v601, 0
        %617 = vmatprep.subr.bf16.mxu0 0
        %618 = vmatpush1.bf16.msra.mxu0 %v615
        %619 = vmatprep.subr.bf16.mxu0 0
        %620 = vmatpush1.bf16.msra.mxu0 0
        %621 = vmatprep.subr.bf16.mxu0 0
        %622 = vmatpush1.bf16.msra.mxu0 0
        %623 = vmatprep.subr.bf16.mxu0 0
        %624 = vmatpush1.bf16.msra.mxu0 0
        %625 = vmatprep.subr.bf16.mxu0 0
        %626 = vmatpush1.bf16.msra.mxu0 0
        %627 = vmatprep.subr.bf16.mxu0 0
        %628 = vmatpush1.bf16.msra.mxu0 0
        %629 = vmatprep.subr.bf16.mxu0 0
        %630 = vmatpush1.bf16.msra.mxu0 0
        %631 = vmatprep.subr.bf16.mxu0 0
        %632 = vmatpush1.bf16.msra.mxu0 0
        %633 = vmatprep.subr.bf16.mxu0 0
        %634 = vmatpush1.bf16.msra.mxu0 0
        %635 = vmatprep.subr.bf16.mxu0 0
        %636 = vmatpush1.bf16.msra.mxu0 0
        %637 = vmatprep.subr.bf16.mxu0 0
        %638 = vmatpush1.bf16.msra.mxu0 0
        %639 = vmatprep.subr.bf16.mxu0 0
        %640 = vmatpush1.bf16.msra.mxu0 0
        %641 = vmatprep.subr.bf16.mxu0 0
        %642 = vmatpush1.bf16.msra.mxu0 0
        %643 = vmatprep.subr.bf16.mxu0 0
        %644 = vmatpush1.bf16.msra.mxu0 0
        %645 = vmatprep.subr.bf16.mxu0 0
        %646 = vmatpush1.bf16.msra.mxu0 0
        %647 = vmatprep.subr.bf16.mxu0 0
        %648 = vmatpush1.bf16.msra.mxu0 0
        %649 = vmatprep.mubr.bf16.mxu0 0
        %650 = vmatmul.mubr.bf16.gmra.mrb[0].mxu0 %v611
        %v651 = vpop.f32.mrb[0].mxu0
        %v652 = vadd.f32 %v607, %v651
        %v653 = vpop.f32.mrb[0].mxu0
        %v654 = vpop.f32.mrb[0].mxu0
        %v655 = vpop.f32.mrb[0].mxu0
        %656 = vdwg.mxu0
        %v657 = vmax.f32 %v652, 0.0
        %v658 = vpack.c.bf16 %v657, %v657
        %v659 = vld [vmem:[#allocation8] sm:$0xf]
        %v660 = vld [vmem:[#allocation8 + $0x4] sm:$0xf]
        %v661 = vld [vmem:[#allocation8 + $0x8] sm:$0xf]
        %v662 = vld [vmem:[#allocation8 + $0xc] sm:$0xf]
        %v663 = vld [vmem:[#allocation8 + $0x10] sm:$0xf]
        %v664 = vld [vmem:[#allocation8 + $0x14] sm:$0xf]
        %v665 = vld [vmem:[#allocation8 + $0x18] sm:$0xf]
        %v666 = vld [vmem:[#allocation8 + $0x1c] sm:$0xf]
        %v667 = vld [vmem:[#allocation8 + $0x20] sm:$0xf]
        %v668 = vld [vmem:[#allocation8 + $0x24] sm:$0xf]
        %v669 = vld [vmem:[#allocation8 + $0x28] sm:$0xf]
        %v670 = vld [vmem:[#allocation8 + $0x2c] sm:$0xf]
        %v671 = vld [vmem:[#allocation8 + $0x30] sm:$0xf]
        %v672 = vld [vmem:[#allocation8 + $0x34] sm:$0xf]
        %v673 = vld [vmem:[#allocation8 + $0x38] sm:$0xf]
        %v674 = vld [vmem:[#allocation8 + $0x3c] sm:$0xf]
        %v691 = vunpack.c.l.b16 %v659
        %v692 = vunpack.c.l.b16 %v660
        %v693 = vunpack.c.l.b16 %v661
        %v694 = vunpack.c.l.b16 %v662
        %v695 = vunpack.c.l.b16 %v663
        %v696 = vunpack.c.l.b16 %v664
        %v697 = vunpack.c.l.b16 %v665
        %v698 = vunpack.c.l.b16 %v666
        %v699 = vunpack.c.l.b16 %v667
        %v700 = vunpack.c.l.b16 %v668
        %v701 = vunpack.c.l.b16 %v669
        %v702 = vunpack.c.l.b16 %v670
        %v703 = vunpack.c.l.b16 %v671
        %v704 = vunpack.c.l.b16 %v672
        %v705 = vunpack.c.l.b16 %v673
        %v706 = vunpack.c.l.b16 %v674
        %v707 = vpack.c.b16 %v692, %v691
        %v708 = vpack.c.b16 %v694, %v693
        %v709 = vpack.c.b16 %v696, %v695
        %v710 = vpack.c.b16 %v698, %v697
        %v711 = vpack.c.b16 %v700, %v699
        %v712 = vpack.c.b16 %v702, %v701
        %v713 = vpack.c.b16 %v704, %v703
        %v714 = vpack.c.b16 %v706, %v705
        %723 = vmatprep.subr.bf16.mxu0 0
        %724 = vmatpush1.bf16.msra.mxu0 %v707
        %725 = vmatprep.subr.bf16.mxu0 0
        %726 = vmatpush1.bf16.msra.mxu0 %v708
        %727 = vmatprep.subr.bf16.mxu0 0
        %728 = vmatpush1.bf16.msra.mxu0 %v709
        %729 = vmatprep.subr.bf16.mxu0 0
        %730 = vmatpush1.bf16.msra.mxu0 %v710
        %731 = vmatprep.subr.bf16.mxu0 0
        %732 = vmatpush1.bf16.msra.mxu0 %v711
        %733 = vmatprep.subr.bf16.mxu0 0
        %734 = vmatpush1.bf16.msra.mxu0 %v712
        %735 = vmatprep.subr.bf16.mxu0 0
        %736 = vmatpush1.bf16.msra.mxu0 %v713
        %737 = vmatprep.subr.bf16.mxu0 0
        %738 = vmatpush1.bf16.msra.mxu0 %v714
        %739 = vmatprep.subr.bf16.mxu0 0
        %740 = vmatpush1.bf16.msra.mxu0 0
        %741 = vmatprep.subr.bf16.mxu0 0
        %742 = vmatpush1.bf16.msra.mxu0 0
        %743 = vmatprep.subr.bf16.mxu0 0
        %744 = vmatpush1.bf16.msra.mxu0 0
        %745 = vmatprep.subr.bf16.mxu0 0
        %746 = vmatpush1.bf16.msra.mxu0 0
        %747 = vmatprep.subr.bf16.mxu0 0
        %748 = vmatpush1.bf16.msra.mxu0 0
        %749 = vmatprep.subr.bf16.mxu0 0
        %750 = vmatpush1.bf16.msra.mxu0 0
        %751 = vmatprep.subr.bf16.mxu0 0
        %752 = vmatpush1.bf16.msra.mxu0 0
        %753 = vmatprep.subr.bf16.mxu0 0
        %754 = vmatpush1.bf16.msra.mxu0 0
        %755 = vmatprep.mubr.bf16.mxu0 0
        %756 = vmatmul.mubr.bf16.gmra.mrb[0].mxu0 %v658
        %v757 = vpop.f32.mrb[0].mxu0
        %v758 = vadd.f32 0.0, %v757
        %v759 = vpop.f32.mrb[0].mxu0
        %v760 = vpop.f32.mrb[0].mxu0
        %v761 = vpop.f32.mrb[0].mxu0
        %762 = vdwg.mxu0
        %v763 = vpack.c.bf16 %v758, %v758
        %v764 = vld [vmem:[%s5] sm:$0x1]
        %v766 = vlaneseq
        %v767 = vshrl.u32 %v766, 7
        %v768 = vsub.s32 0, %v767
        %v769 = vrot.slane %v764, %v768
        %v772 = vsel %vm613, %v763, 0
        %774 = vmatprep.subr.bf16.mxu0 0
        %775 = vmatpush1.bf16.msra.mxu0 %v772
        %776 = vmatprep.subr.bf16.mxu0 0
        %777 = vmatpush1.bf16.msra.mxu0 0
        %778 = vmatprep.subr.bf16.mxu0 0
        %779 = vmatpush1.bf16.msra.mxu0 0
        %780 = vmatprep.subr.bf16.mxu0 0
        %781 = vmatpush1.bf16.msra.mxu0 0
        %782 = vmatprep.subr.bf16.mxu0 0
        %783 = vmatpush1.bf16.msra.mxu0 0
        %784 = vmatprep.subr.bf16.mxu0 0
        %785 = vmatpush1.bf16.msra.mxu0 0
        %786 = vmatprep.subr.bf16.mxu0 0
        %787 = vmatpush1.bf16.msra.mxu0 0
        %788 = vmatprep.subr.bf16.mxu0 0
        %789 = vmatpush1.bf16.msra.mxu0 0
        %790 = vmatprep.subr.bf16.mxu0 0
        %791 = vmatpush1.bf16.msra.mxu0 0
        %792 = vmatprep.subr.bf16.mxu0 0
        %793 = vmatpush1.bf16.msra.mxu0 0
        %794 = vmatprep.subr.bf16.mxu0 0
        %795 = vmatpush1.bf16.msra.mxu0 0
        %796 = vmatprep.subr.bf16.mxu0 0
        %797 = vmatpush1.bf16.msra.mxu0 0
        %798 = vmatprep.subr.bf16.mxu0 0
        %799 = vmatpush1.bf16.msra.mxu0 0
        %800 = vmatprep.subr.bf16.mxu0 0
        %801 = vmatpush1.bf16.msra.mxu0 0
        %802 = vmatprep.subr.bf16.mxu0 0
        %803 = vmatpush1.bf16.msra.mxu0 0
        %804 = vmatprep.subr.bf16.mxu0 0
        %805 = vmatpush1.bf16.msra.mxu0 0
        %806 = vmatprep.mubr.bf16.mxu0 0
        %807 = vmatmul.mubr.bf16.gmra.mrb[0].mxu0 %v611
        %v808 = vpop.f32.mrb[0].mxu0
        %v809 = vadd.f32 %v769, %v808
        %v810 = vpop.f32.mrb[0].mxu0
        %v811 = vpop.f32.mrb[0].mxu0
        %v812 = vpop.f32.mrb[0].mxu0
        %813 = vdwg.mxu0
        %v814 = vmax.f32 %v809, 0.0
        %v815 = vpack.c.bf16 %v814, %v814
        %v816 = vld [vmem:[#allocation10] sm:$0xf]
        %v817 = vld [vmem:[#allocation10 + $0x4] sm:$0xf]
        %v818 = vld [vmem:[#allocation10 + $0x8] sm:$0xf]
        %v819 = vld [vmem:[#allocation10 + $0xc] sm:$0xf]
        %v820 = vld [vmem:[#allocation10 + $0x10] sm:$0xf]
        %v821 = vld [vmem:[#allocation10 + $0x14] sm:$0xf]
        %v822 = vld [vmem:[#allocation10 + $0x18] sm:$0xf]
        %v823 = vld [vmem:[#allocation10 + $0x1c] sm:$0xf]
        %v824 = vld [vmem:[#allocation10 + $0x20] sm:$0xf]
        %v825 = vld [vmem:[#allocation10 + $0x24] sm:$0xf]
        %v826 = vld [vmem:[#allocation10 + $0x28] sm:$0xf]
        %v827 = vld [vmem:[#allocation10 + $0x2c] sm:$0xf]
        %v828 = vld [vmem:[#allocation10 + $0x30] sm:$0xf]
        %v829 = vld [vmem:[#allocation10 + $0x34] sm:$0xf]
        %v830 = vld [vmem:[#allocation10 + $0x38] sm:$0xf]
        %v831 = vld [vmem:[#allocation10 + $0x3c] sm:$0xf]
        %v848 = vunpack.c.l.b16 %v816
        %v849 = vunpack.c.l.b16 %v817
        %v850 = vunpack.c.l.b16 %v818
        %v851 = vunpack.c.l.b16 %v819
        %v852 = vunpack.c.l.b16 %v820
        %v853 = vunpack.c.l.b16 %v821
        %v854 = vunpack.c.l.b16 %v822
        %v855 = vunpack.c.l.b16 %v823
        %v856 = vunpack.c.l.b16 %v824
        %v857 = vunpack.c.l.b16 %v825
        %v858 = vunpack.c.l.b16 %v826
        %v859 = vunpack.c.l.b16 %v827
        %v860 = vunpack.c.l.b16 %v828
        %v861 = vunpack.c.l.b16 %v829
        %v862 = vunpack.c.l.b16 %v830
        %v863 = vunpack.c.l.b16 %v831
        %v864 = vpack.c.b16 %v849, %v848
        %v865 = vpack.c.b16 %v851, %v850
        %v866 = vpack.c.b16 %v853, %v852
        %v867 = vpack.c.b16 %v855, %v854
        %v868 = vpack.c.b16 %v857, %v856
        %v869 = vpack.c.b16 %v859, %v858
        %v870 = vpack.c.b16 %v861, %v860
        %v871 = vpack.c.b16 %v863, %v862
        %880 = vmatprep.subr.bf16.mxu0 0
        %881 = vmatpush1.bf16.msra.mxu0 %v864
        %882 = vmatprep.subr.bf16.mxu0 0
        %883 = vmatpush1.bf16.msra.mxu0 %v865
        %884 = vmatprep.subr.bf16.mxu0 0
        %885 = vmatpush1.bf16.msra.mxu0 %v866
        %886 = vmatprep.subr.bf16.mxu0 0
        %887 = vmatpush1.bf16.msra.mxu0 %v867
        %888 = vmatprep.subr.bf16.mxu0 0
        %889 = vmatpush1.bf16.msra.mxu0 %v868
        %890 = vmatprep.subr.bf16.mxu0 0
        %891 = vmatpush1.bf16.msra.mxu0 %v869
        %892 = vmatprep.subr.bf16.mxu0 0
        %893 = vmatpush1.bf16.msra.mxu0 %v870
        %894 = vmatprep.subr.bf16.mxu0 0
        %895 = vmatpush1.bf16.msra.mxu0 %v871
        %896 = vmatprep.subr.bf16.mxu0 0
        %897 = vmatpush1.bf16.msra.mxu0 0
        %898 = vmatprep.subr.bf16.mxu0 0
        %899 = vmatpush1.bf16.msra.mxu0 0
        %900 = vmatprep.subr.bf16.mxu0 0
        %901 = vmatpush1.bf16.msra.mxu0 0
        %902 = vmatprep.subr.bf16.mxu0 0
        %903 = vmatpush1.bf16.msra.mxu0 0
        %904 = vmatprep.subr.bf16.mxu0 0
        %905 = vmatpush1.bf16.msra.mxu0 0
        %906 = vmatprep.subr.bf16.mxu0 0
        %907 = vmatpush1.bf16.msra.mxu0 0
        %908 = vmatprep.subr.bf16.mxu0 0
        %909 = vmatpush1.bf16.msra.mxu0 0
        %910 = vmatprep.subr.bf16.mxu0 0
        %911 = vmatpush1.bf16.msra.mxu0 0
        %912 = vmatprep.mubr.bf16.mxu0 0
        %913 = vmatmul.mubr.bf16.gmra.mrb[0].mxu0 %v815
        %v914 = vpop.f32.mrb[0].mxu0
        %v915 = vadd.f32 0.0, %v914
        %v916 = vpop.f32.mrb[0].mxu0
        %v917 = vpop.f32.mrb[0].mxu0
        %v918 = vpop.f32.mrb[0].mxu0
        %919 = vdwg.mxu0
        %v920 = vpack.c.bf16 %v915, %v915
        %v921 = vld [vmem:[%s7] sm:$0x1]
        %v923 = vlaneseq
        %v924 = vshrl.u32 %v923, 7
        %v925 = vsub.s32 0, %v924
        %v926 = vrot.slane %v921, %v925
        %v929 = vsel %vm613, %v920, 0
        %931 = vmatprep.subr.bf16.mxu0 0
        %932 = vmatpush1.bf16.msra.mxu0 %v929
        %933 = vmatprep.subr.bf16.mxu0 0
        %934 = vmatpush1.bf16.msra.mxu0 0
        %935 = vmatprep.subr.bf16.mxu0 0
        %936 = vmatpush1.bf16.msra.mxu0 0
        %937 = vmatprep.subr.bf16.mxu0 0
        %938 = vmatpush1.bf16.msra.mxu0 0
        %939 = vmatprep.subr.bf16.mxu0 0
        %940 = vmatpush1.bf16.msra.mxu0 0
        %941 = vmatprep.subr.bf16.mxu0 0
        %942 = vmatpush1.bf16.msra.mxu0 0
        %943 = vmatprep.subr.bf16.mxu0 0
        %944 = vmatpush1.bf16.msra.mxu0 0
        %945 = vmatprep.subr.bf16.mxu0 0
        %946 = vmatpush1.bf16.msra.mxu0 0
        %947 = vmatprep.subr.bf16.mxu0 0
        %948 = vmatpush1.bf16.msra.mxu0 0
        %949 = vmatprep.subr.bf16.mxu0 0
        %950 = vmatpush1.bf16.msra.mxu0 0
        %951 = vmatprep.subr.bf16.mxu0 0
        %952 = vmatpush1.bf16.msra.mxu0 0
        %953 = vmatprep.subr.bf16.mxu0 0
        %954 = vmatpush1.bf16.msra.mxu0 0
        %955 = vmatprep.subr.bf16.mxu0 0
        %956 = vmatpush1.bf16.msra.mxu0 0
        %957 = vmatprep.subr.bf16.mxu0 0
        %958 = vmatpush1.bf16.msra.mxu0 0
        %959 = vmatprep.subr.bf16.mxu0 0
        %960 = vmatpush1.bf16.msra.mxu0 0
        %961 = vmatprep.subr.bf16.mxu0 0
        %962 = vmatpush1.bf16.msra.mxu0 0
        %963 = vmatprep.mubr.bf16.mxu0 0
        %964 = vmatmul.mubr.bf16.gmra.mrb[0].mxu0 %v611
        %v965 = vpop.f32.mrb[0].mxu0
        %v966 = vadd.f32 %v926, %v965
        %v967 = vpop.f32.mrb[0].mxu0
        %v968 = vpop.f32.mrb[0].mxu0
        %v969 = vpop.f32.mrb[0].mxu0
        %970 = vdwg.mxu0
        %v971 = vmax.f32 %v966, 0.0
        %v972 = vpack.c.bf16 %v971, %v971
        %v973 = vld [vmem:[#allocation11] sm:$0xf]
        %v974 = vld [vmem:[#allocation11 + $0x4] sm:$0xf]
        %v975 = vld [vmem:[#allocation11 + $0x8] sm:$0xf]
        %v976 = vld [vmem:[#allocation11 + $0xc] sm:$0xf]
        %v977 = vld [vmem:[#allocation11 + $0x10] sm:$0xf]
        %v978 = vld [vmem:[#allocation11 + $0x14] sm:$0xf]
        %v979 = vld [vmem:[#allocation11 + $0x18] sm:$0xf]
        %v980 = vld [vmem:[#allocation11 + $0x1c] sm:$0xf]
        %v981 = vld [vmem:[#allocation11 + $0x20] sm:$0xf]
        %v982 = vld [vmem:[#allocation11 + $0x24] sm:$0xf]
        %v983 = vld [vmem:[#allocation11 + $0x28] sm:$0xf]
        %v984 = vld [vmem:[#allocation11 + $0x2c] sm:$0xf]
        %v985 = vld [vmem:[#allocation11 + $0x30] sm:$0xf]
        %v986 = vld [vmem:[#allocation11 + $0x34] sm:$0xf]
        %v987 = vld [vmem:[#allocation11 + $0x38] sm:$0xf]
        %v988 = vld [vmem:[#allocation11 + $0x3c] sm:$0xf]
        %v1005 = vunpack.c.l.b16 %v973
        %v1006 = vunpack.c.l.b16 %v974
        %v1007 = vunpack.c.l.b16 %v975
        %v1008 = vunpack.c.l.b16 %v976
        %v1009 = vunpack.c.l.b16 %v977
        %v1010 = vunpack.c.l.b16 %v978
        %v1011 = vunpack.c.l.b16 %v979
        %v1012 = vunpack.c.l.b16 %v980
        %v1013 = vunpack.c.l.b16 %v981
        %v1014 = vunpack.c.l.b16 %v982
        %v1015 = vunpack.c.l.b16 %v983
        %v1016 = vunpack.c.l.b16 %v984
        %v1017 = vunpack.c.l.b16 %v985
        %v1018 = vunpack.c.l.b16 %v986
        %v1019 = vunpack.c.l.b16 %v987
        %v1020 = vunpack.c.l.b16 %v988
        %v1021 = vpack.c.b16 %v1006, %v1005
        %v1022 = vpack.c.b16 %v1008, %v1007
        %v1023 = vpack.c.b16 %v1010, %v1009
        %v1024 = vpack.c.b16 %v1012, %v1011
        %v1025 = vpack.c.b16 %v1014, %v1013
        %v1026 = vpack.c.b16 %v1016, %v1015
        %v1027 = vpack.c.b16 %v1018, %v1017
        %v1028 = vpack.c.b16 %v1020, %v1019
        %1037 = vmatprep.subr.bf16.mxu0 0
        %1038 = vmatpush1.bf16.msra.mxu0 %v1021
        %1039 = vmatprep.subr.bf16.mxu0 0
        %1040 = vmatpush1.bf16.msra.mxu0 %v1022
        %1041 = vmatprep.subr.bf16.mxu0 0
        %1042 = vmatpush1.bf16.msra.mxu0 %v1023
        %1043 = vmatprep.subr.bf16.mxu0 0
        %1044 = vmatpush1.bf16.msra.mxu0 %v1024
        %1045 = vmatprep.subr.bf16.mxu0 0
        %1046 = vmatpush1.bf16.msra.mxu0 %v1025
        %1047 = vmatprep.subr.bf16.mxu0 0
        %1048 = vmatpush1.bf16.msra.mxu0 %v1026
        %1049 = vmatprep.subr.bf16.mxu0 0
        %1050 = vmatpush1.bf16.msra.mxu0 %v1027
        %1051 = vmatprep.subr.bf16.mxu0 0
        %1052 = vmatpush1.bf16.msra.mxu0 %v1028
        %1053 = vmatprep.subr.bf16.mxu0 0
        %1054 = vmatpush1.bf16.msra.mxu0 0
        %1055 = vmatprep.subr.bf16.mxu0 0
        %1056 = vmatpush1.bf16.msra.mxu0 0
        %1057 = vmatprep.subr.bf16.mxu0 0
        %1058 = vmatpush1.bf16.msra.mxu0 0
        %1059 = vmatprep.subr.bf16.mxu0 0
        %1060 = vmatpush1.bf16.msra.mxu0 0
        %1061 = vmatprep.subr.bf16.mxu0 0
        %1062 = vmatpush1.bf16.msra.mxu0 0
        %1063 = vmatprep.subr.bf16.mxu0 0
        %1064 = vmatpush1.bf16.msra.mxu0 0
        %1065 = vmatprep.subr.bf16.mxu0 0
        %1066 = vmatpush1.bf16.msra.mxu0 0
        %1067 = vmatprep.subr.bf16.mxu0 0
        %1068 = vmatpush1.bf16.msra.mxu0 0
        %1069 = vmatprep.mubr.bf16.mxu0 0
        %1070 = vmatmul.mubr.bf16.gmra.mrb[0].mxu0 %v972
        %v1071 = vpop.f32.mrb[0].mxu0
        %v1072 = vadd.f32 0.0, %v1071
        %v1073 = vpop.f32.mrb[0].mxu0
        %v1074 = vpop.f32.mrb[0].mxu0
        %v1075 = vpop.f32.mrb[0].mxu0
        %1076 = vdwg.mxu0
        %v1077 = vpack.c.bf16 %v1072, %v1072
        %v1078 = vld [vmem:[%s9] sm:$0x1]
        %v1080 = vlaneseq
        %v1081 = vshrl.u32 %v1080, 7
        %v1082 = vsub.s32 0, %v1081
        %v1083 = vrot.slane %v1078, %v1082
        %v1086 = vsel %vm613, %v1077, 0
        %1088 = vmatprep.subr.bf16.mxu0 0
        %1089 = vmatpush1.bf16.msra.mxu0 %v1086
        %1090 = vmatprep.subr.bf16.mxu0 0
        %1091 = vmatpush1.bf16.msra.mxu0 0
        %1092 = vmatprep.subr.bf16.mxu0 0
        %1093 = vmatpush1.bf16.msra.mxu0 0
        %1094 = vmatprep.subr.bf16.mxu0 0
        %1095 = vmatpush1.bf16.msra.mxu0 0
        %1096 = vmatprep.subr.bf16.mxu0 0
        %1097 = vmatpush1.bf16.msra.mxu0 0
        %1098 = vmatprep.subr.bf16.mxu0 0
        %1099 = vmatpush1.bf16.msra.mxu0 0
        %1100 = vmatprep.subr.bf16.mxu0 0
        %1101 = vmatpush1.bf16.msra.mxu0 0
        %1102 = vmatprep.subr.bf16.mxu0 0
        %1103 = vmatpush1.bf16.msra.mxu0 0
        %1104 = vmatprep.subr.bf16.mxu0 0
        %1105 = vmatpush1.bf16.msra.mxu0 0
        %1106 = vmatprep.subr.bf16.mxu0 0
        %1107 = vmatpush1.bf16.msra.mxu0 0
        %1108 = vmatprep.subr.bf16.mxu0 0
        %1109 = vmatpush1.bf16.msra.mxu0 0
        %1110 = vmatprep.subr.bf16.mxu0 0
        %1111 = vmatpush1.bf16.msra.mxu0 0
        %1112 = vmatprep.subr.bf16.mxu0 0
        %1113 = vmatpush1.bf16.msra.mxu0 0
        %1114 = vmatprep.subr.bf16.mxu0 0
        %1115 = vmatpush1.bf16.msra.mxu0 0
        %1116 = vmatprep.subr.bf16.mxu0 0
        %1117 = vmatpush1.bf16.msra.mxu0 0
        %1118 = vmatprep.subr.bf16.mxu0 0
        %1119 = vmatpush1.bf16.msra.mxu0 0
        %1120 = vmatprep.mubr.bf16.mxu0 0
        %1121 = vmatmul.mubr.bf16.gmra.mrb[0].mxu0 %v611
        %v1122 = vpop.f32.mrb[0].mxu0
        %v1123 = vadd.f32 %v1083, %v1122
        %v1124 = vpop.f32.mrb[0].mxu0
        %v1125 = vpop.f32.mrb[0].mxu0
        %v1126 = vpop.f32.mrb[0].mxu0
        %1127 = vdwg.mxu0
        %v1128 = vmax.f32 %v1123, 0.0
        %v1129 = vpack.c.bf16 %v1128, %v1128
        %v1130 = vld [vmem:[#allocation13] sm:$0xf]
        %v1131 = vld [vmem:[#allocation13 + $0x4] sm:$0xf]
        %v1132 = vld [vmem:[#allocation13 + $0x8] sm:$0xf]
        %v1133 = vld [vmem:[#allocation13 + $0xc] sm:$0xf]
        %v1134 = vld [vmem:[#allocation13 + $0x10] sm:$0xf]
        %v1135 = vld [vmem:[#allocation13 + $0x14] sm:$0xf]
        %v1136 = vld [vmem:[#allocation13 + $0x18] sm:$0xf]
        %v1137 = vld [vmem:[#allocation13 + $0x1c] sm:$0xf]
        %v1138 = vld [vmem:[#allocation13 + $0x20] sm:$0xf]
        %v1139 = vld [vmem:[#allocation13 + $0x24] sm:$0xf]
        %v1140 = vld [vmem:[#allocation13 + $0x28] sm:$0xf]
        %v1141 = vld [vmem:[#allocation13 + $0x2c] sm:$0xf]
        %v1142 = vld [vmem:[#allocation13 + $0x30] sm:$0xf]
        %v1143 = vld [vmem:[#allocation13 + $0x34] sm:$0xf]
        %v1144 = vld [vmem:[#allocation13 + $0x38] sm:$0xf]
        %v1145 = vld [vmem:[#allocation13 + $0x3c] sm:$0xf]
        %v1146 = vld [vmem:[%s11] sm:$0x1]
        %v1148 = vlaneseq
        %v1149 = vshrl.u32 %v1148, 7
        %v1150 = vsub.s32 0, %v1149
        %v1151 = vrot.slane %v1146, %v1150
        %v1169 = vunpack.c.l.b16 %v1130
        %v1170 = vunpack.c.l.b16 %v1131
        %v1171 = vunpack.c.l.b16 %v1132
        %v1172 = vunpack.c.l.b16 %v1133
        %v1173 = vunpack.c.l.b16 %v1134
        %v1174 = vunpack.c.l.b16 %v1135
        %v1175 = vunpack.c.l.b16 %v1136
        %v1176 = vunpack.c.l.b16 %v1137
        %v1177 = vunpack.c.l.b16 %v1138
        %v1178 = vunpack.c.l.b16 %v1139
        %v1179 = vunpack.c.l.b16 %v1140
        %v1180 = vunpack.c.l.b16 %v1141
        %v1181 = vunpack.c.l.b16 %v1142
        %v1182 = vunpack.c.l.b16 %v1143
        %v1183 = vunpack.c.l.b16 %v1144
        %v1184 = vunpack.c.l.b16 %v1145
        %v1185 = vpack.c.b16 %v1170, %v1169
        %v1186 = vpack.c.b16 %v1172, %v1171
        %v1187 = vpack.c.b16 %v1174, %v1173
        %v1188 = vpack.c.b16 %v1176, %v1175
        %v1189 = vpack.c.b16 %v1178, %v1177
        %v1190 = vpack.c.b16 %v1180, %v1179
        %v1191 = vpack.c.b16 %v1182, %v1181
        %v1192 = vpack.c.b16 %v1184, %v1183
        %1201 = vmatprep.subr.bf16.mxu0 0
        %1202 = vmatpush1.bf16.msra.mxu0 %v1185
        %1203 = vmatprep.subr.bf16.mxu0 0
        %1204 = vmatpush1.bf16.msra.mxu0 %v1186
        %1205 = vmatprep.subr.bf16.mxu0 0
        %1206 = vmatpush1.bf16.msra.mxu0 %v1187
        %1207 = vmatprep.subr.bf16.mxu0 0
        %1208 = vmatpush1.bf16.msra.mxu0 %v1188
        %1209 = vmatprep.subr.bf16.mxu0 0
        %1210 = vmatpush1.bf16.msra.mxu0 %v1189
        %1211 = vmatprep.subr.bf16.mxu0 0
        %1212 = vmatpush1.bf16.msra.mxu0 %v1190
        %1213 = vmatprep.subr.bf16.mxu0 0
        %1214 = vmatpush1.bf16.msra.mxu0 %v1191
        %1215 = vmatprep.subr.bf16.mxu0 0
        %1216 = vmatpush1.bf16.msra.mxu0 %v1192
        %1217 = vmatprep.subr.bf16.mxu0 0
        %1218 = vmatpush1.bf16.msra.mxu0 0
        %1219 = vmatprep.subr.bf16.mxu0 0
        %1220 = vmatpush1.bf16.msra.mxu0 0
        %1221 = vmatprep.subr.bf16.mxu0 0
        %1222 = vmatpush1.bf16.msra.mxu0 0
        %1223 = vmatprep.subr.bf16.mxu0 0
        %1224 = vmatpush1.bf16.msra.mxu0 0
        %1225 = vmatprep.subr.bf16.mxu0 0
        %1226 = vmatpush1.bf16.msra.mxu0 0
        %1227 = vmatprep.subr.bf16.mxu0 0
        %1228 = vmatpush1.bf16.msra.mxu0 0
        %1229 = vmatprep.subr.bf16.mxu0 0
        %1230 = vmatpush1.bf16.msra.mxu0 0
        %1231 = vmatprep.subr.bf16.mxu0 0
        %1232 = vmatpush1.bf16.msra.mxu0 0
        %1233 = vmatprep.mubr.bf16.mxu0 0
        %1234 = vmatmul.mubr.bf16.gmra.mrb[0].mxu0 %v1129
        %v1235 = vpop.f32.mrb[0].mxu0
        %v1236 = vadd.f32 %v1151, %v1235
        %v1237 = vpop.f32.mrb[0].mxu0
        %v1238 = vpop.f32.mrb[0].mxu0
        %v1239 = vpop.f32.mrb[0].mxu0
        %1240 = vdwg.mxu0
        %1241 = vmax.xlane.f32.xlu0 %v1236
        %v1242 = vpop.xlane.xlu0 %1241
        %v1243 = vsub.f32 %v1236, %v1242
        %v1244 = vmul.f32 %v1243, 1.442695
        %v1245 = vpow.pop %v1244
        %1246 = vadd.xlane.f32.xlu0 %v1245
        %v1247 = vpop.xlane.xlu0 %1246
        %v1248 = vlog2.pop %v1247
        %v1249 = vmul.f32 %v1248, 0.6931472
        %v1250 = vsub.f32 %v1243, %v1249
        %1251 = vst [vmem:[%s537] sm:$0xff] %v1250
        %s1252 = sand.u32 %s304, 1
        %s1253 = scalar_lea.sflag [#allocation4], %s1252
        %s1254 = sand.u32 %s304, 1
        %s1255 = smul.addr %s1254, 8
        %s1256 = scalar_lea.vmem [#allocation14], %s1255
        // Predicated region
        $region97: #{tpu_custom_call.1} parent=67 // pred_check
          %p1257 = pneg %p314
        $region98: #{tpu_custom_call.1} parent=67 // pred_check_branch
          %1259 = sbr.rel (%p1257) target = $region100
        $region99: #{tpu_custom_call.1} parent=67 // pred_region
          %s1261 = ssub.s32 128, 128
          %1262 = vsyncadd %s1253, %s1261
          %s1263 = smul.addr %s34, 128
          %s1264 = scalar_lea.hbm %s12, %s1263
          %s1266 = sshll.u32 %s1256, 4
          %s1267 = int_to_ptr.vmem [resolvable:$true] %s1266
          %1269 = dma.vmem_to_hbm [thread:$0]  %s1267, 128, %s1264, %s1253
        $region100: #{tpu_custom_call.1} parent=67 // pred_fallthru
          _
      $region68: #{tpu_custom_call.1} parent=5 // pred_fallthru
        _
      %p1270 = scmp.le.s32.totalorder 2, %s29
      // Predicated region
      $region101: #{tpu_custom_call.1} parent=5 // pred_check
        %p1271 = pneg %p1270
      $region102: #{tpu_custom_call.1} parent=5 // pred_check_branch
        %1273 = sbr.rel (%p1271) target = $region104
      $region103: #{tpu_custom_call.1} parent=5 // pred_region
        %s1274 = ssub.s32 %s29, 2
        // Predicated region
        $region105: #{tpu_custom_call.1} parent=103 // pred_check
          %p1275 = pneg %p320
        $region106: #{tpu_custom_call.1} parent=103 // pred_check_branch
          %1277 = sbr.rel (%p1275) target = $region108
        $region107: #{tpu_custom_call.1} parent=103 // pred_region
          %s1278 = sand.u32 %s305, 1
          %s1279 = scalar_lea.sflag [#allocation4], %s1278
          %s1280 = sand.u32 %s305, 1
          %s1281 = smul.addr %s1280, 8
          %s1282 = scalar_lea.vmem [#allocation14], %s1281
          %1283 = dma.done %s1279, 128
        $region108: #{tpu_custom_call.1} parent=103 // pred_fallthru
          _
      $region104: #{tpu_custom_call.1} parent=5 // pred_fallthru
        _
    $region6: #{tpu_custom_call.1} parent=1 // loop_footer
      %s33 = sadd.s32 1, %s29
    $region7: #{tpu_custom_call.1} parent=1 // loop_footer_branch
      %28 = sbr.rel target = $region3
    $region8: #{tpu_custom_call.1} parent=1 // loop_exit
      _
    %1284 = vsyncpa [#allocation3], 1
    %s1285 = scalar_lea.sflag [#allocation3], 1
    %1286 = vsyncpa %s1285, 1
    %1287 = vsyncpa [#allocation6], 1
    %s1288 = scalar_lea.sflag [#allocation6], 1
    %1289 = vsyncpa %s1288, 1
    %1290 = vsyncpa [#allocation9], 1
    %1291 = vsyncpa [#allocation12], 1
    %1292 = vsyncpa [#allocation4], 1
    %s1293 = scalar_lea.sflag [#allocation4], 1
    %1294 = vsyncpa %s1293, 1

</llo_original>
